<compile_context>
chip_gen: v5e
topology: v5e:2x2
jax: 0.10.0
libtpu: 0.0.40
codegen_flags: <defaults>
</compile_context>

<pallas_src>
import functools

import jax
import jax.numpy as jnp
from jax import lax
from jax.experimental import pallas as pl
from jax.experimental.pallas import tpu as pltpu


def _layer_norm(x, gamma, beta, eps=1e-5):
    mu = jnp.mean(x, axis=-1, keepdims=True)
    xc = x - mu
    var = jnp.mean(xc * xc, axis=-1, keepdims=True)
    return xc * lax.rsqrt(var + eps) * gamma + beta


def transformer_layer_kernel(
    x_ref,                    # (G, S, D) input slab (G batch elements)
    wqkv_ref, bqkv_ref,       # pre-fused projection: (D, 3H) bf16, (1, 3H) f32
    wout_ref, bout_ref,       # MHA out_proj:         (H, H) bf16,  (1, H) f32
    ln1g_ref, ln1b_ref,       # LayerNorm1:           (1, H) f32
    w1_ref, b1_ref,           # FFN up:               (H, 4H) bf16, (1, 4H) f32
    w2_ref, b2_ref,           # FFN down:             (4H, H) bf16, (1, H) f32
    ln2g_ref, ln2b_ref,       # LayerNorm2:           (1, H) f32
    out_ref,                  # (G, S, H) output slab
    *, num_heads, head_dim):
    H = num_heads * head_dim
    G, S, D = x_ref.shape

    x = x_ref[...].astype(jnp.float32)            # (G, S, D)
    xf = x.reshape(G * S, D)                      # leading-dim merge: layout-free

    # --- fused (qkv_proj o in_proj) projection: one bf16 MXU pass --------------
    qkv = jnp.dot(xf.astype(jnp.bfloat16), wqkv_ref[...],
                  preferred_element_type=jnp.float32) + bqkv_ref[...]   # (G*S, 3H)
    qp = qkv[:, 0 * H:1 * H].reshape(G, S, H)     # already scaled by 1/sqrt(hd)
    kp = qkv[:, 1 * H:2 * H].reshape(G, S, H)
    vp = qkv[:, 2 * H:3 * H].reshape(G, S, H)

    # K transpose hoisted out of the head loop (one XLU transpose per group).
    kpT = jnp.swapaxes(kp, 1, 2).astype(jnp.bfloat16)     # (G, H, S)
    vp_bf = vp.astype(jnp.bfloat16)

    # --- per-head scaled dot-product attention ---------------------------------
    # Lane masks on the full-width (G, S, H) tensors select head h: masking q's
    # lanes restricts the QK contraction to head h, masking the (e @ v') result
    # keeps only head h's output columns.  Softmax normalization is deferred:
    # e @ v' is scaled by 1/sum(e) afterwards via the EUP approx reciprocal.
    lane = lax.broadcasted_iota(jnp.int32, (G, S, H), 2)

    def head_body(h, ctx):
        lo = h * head_dim
        m = jnp.logical_and(lane >= lo, lane < lo + head_dim)
        qh = jnp.where(m, qp, 0.0).astype(jnp.bfloat16)
        s = jnp.einsum("gqd,gdk->gqk", qh, kpT,
                       preferred_element_type=jnp.float32)        # (G, S, S)
        s = s - jnp.max(s, axis=-1, keepdims=True)
        e = jnp.exp(s)
        inv_denom = pl.reciprocal(jnp.sum(e, axis=-1, keepdims=True), approx=True)
        pv = jnp.einsum("gqk,gkd->gqd", e.astype(jnp.bfloat16), vp_bf,
                        preferred_element_type=jnp.float32)       # (G, S, H)
        return ctx + jnp.where(m, pv * inv_denom, 0.0)

    ctx = lax.fori_loop(0, num_heads, head_body,
                        jnp.zeros((G, S, H), jnp.float32))
    ctx = ctx.reshape(G * S, H)

    # --- MHA out_proj, residual + LayerNorm1 -----------------------------------
    attn = jnp.dot(ctx.astype(jnp.bfloat16), wout_ref[...],
                   preferred_element_type=jnp.float32) + bout_ref[...]
    y1 = _layer_norm(xf + attn, ln1g_ref[...], ln1b_ref[...])

    # --- FFN, residual + LayerNorm2 ---------------------------------------------
    h1 = jnp.dot(y1.astype(jnp.bfloat16), w1_ref[...],
                 preferred_element_type=jnp.float32) + b1_ref[...]
    h1 = jnp.maximum(h1, 0.0)
    h2 = jnp.dot(h1.astype(jnp.bfloat16), w2_ref[...],
                 preferred_element_type=jnp.float32) + b2_ref[...]
    out = _layer_norm(y1 + h2, ln2g_ref[...], ln2b_ref[...])

    out_ref[...] = out.reshape(G, S, H).astype(out_ref.dtype)


def regular_transformer_layer(x, params, *, num_heads):
    """Pallas implementation of RegularTransformerLayer.forward.

    Args:
      x: (B, S, D) input; D must equal hidden_dim (residual x + attn).
      params: dict of weights in "math" layout (in_features, out_features)
              with (1, features) biases / LayerNorm parameters.
      num_heads: number of attention heads.
    Returns:
      (B, S, H) output.
    """
    B, S, D = x.shape
    H = params["w_out"].shape[0]
    assert D == H, "residual x + attn_output requires input_dim == hidden_dim"
    assert H % num_heads == 0
    head_dim = H // num_heads
    f32, bf16 = jnp.float32, jnp.bfloat16

    # --- host-side algebraic fusion of qkv_proj and the MHA in_proj ------------
    # q' = (x @ Wq + bq) @ Win_q + bin_q  =  x @ (Wq Win_q) + (bq Win_q + bin_q)
    # (same for k', v'); the 1/sqrt(head_dim) score scale is folded into the q
    # column block so the kernel applies no explicit scale at all.
    w_qkv, b_qkv = params["w_qkv"].astype(f32), params["b_qkv"].astype(f32)
    w_in, b_in = params["w_in"].astype(f32), params["b_in"].astype(f32)
    scale = 1.0 / float(head_dim) ** 0.5
    w_parts, b_parts = [], []
    for i, sc in zip(range(3), (scale, 1.0, 1.0)):
        wi = w_in[:, i * H:(i + 1) * H]
        w_parts.append(sc * (w_qkv[:, i * H:(i + 1) * H] @ wi))
        b_parts.append(sc * (b_qkv[:, i * H:(i + 1) * H] @ wi
                             + b_in[:, i * H:(i + 1) * H]))
    w_eff = jnp.concatenate(w_parts, axis=1)          # (D, 3H)
    b_eff = jnp.concatenate(b_parts, axis=1)          # (1, 3H)

    # bf16 weights for the MXU (f32 accumulation in-kernel); biases / LN stay f32.
    ordered = [
        w_eff.astype(bf16), b_eff.astype(f32),
        params["w_out"].astype(bf16), params["b_out"].astype(f32),
        params["ln1_g"].astype(f32), params["ln1_b"].astype(f32),
        params["w_ffn1"].astype(bf16), params["b_ffn1"].astype(f32),
        params["w_ffn2"].astype(bf16), params["b_ffn2"].astype(f32),
        params["ln2_g"].astype(f32), params["ln2_b"].astype(f32),
    ]

    # --- grid: fold G batch elements per step so matmuls see ~128 rows ---------
    G = max(1, min(B, 128 // max(S, 1)))
    while B % G:
        G -= 1
    grid = (B // G,)
    # TODO(synk): when B // G == 1 on v7x, add a second "parallel" query-tile
    # grid axis (flash-style attention) so both TensorCores get work.

    # --- VMEM budget: raise the scoped limit toward the chip's capacity --------
    try:
        vmem_cap = int(pltpu.get_tpu_info().vmem_capacity_bytes)
    except Exception:
        vmem_cap = 64 * 1024 * 1024          # conservative (v7x physical)
    vmem_limit = min(int(vmem_cap * 0.85), 100 * 1024 * 1024)

    # --- cost estimate matching what the kernel actually executes --------------
    flops = 2 * B * S * (D * 3 * H            # fused projection
                         + H * H              # MHA out_proj
                         + 8 * H * H)         # FFN  H -> 4H -> H
    flops += 4 * B * num_heads * S * S * H    # lane-masked full-width QK + PV
    transcendentals = B * (num_heads * S * S + num_heads * S + 2 * S)
    bytes_accessed = (x.size * x.dtype.itemsize
                      + B * S * H * x.dtype.itemsize
                      + sum(int(a.size) * a.dtype.itemsize for a in ordered))

    kernel = functools.partial(transformer_layer_kernel,
                               num_heads=num_heads, head_dim=head_dim)

    def build(single_buffer_weights):
        def w_spec(a):
            # Whole-array block, constant index map: DMA'd once, VMEM-resident.
            if single_buffer_weights:
                return pl.BlockSpec(a.shape, lambda b: (0,) * a.ndim,
                                    pipeline_mode=pl.Buffered(1))
            return pl.BlockSpec(a.shape, lambda b: (0,) * a.ndim)

        in_specs = ([pl.BlockSpec((G, S, D), lambda b: (b, 0, 0))]
                    + [w_spec(a) for a in ordered])
        out_specs = pl.BlockSpec((G, S, H), lambda b: (b, 0, 0))
        return pl.pallas_call(
            kernel,
            out_shape=jax.ShapeDtypeStruct((B, S, H), x.dtype),
            grid=grid,
            in_specs=in_specs,
            out_specs=out_specs,
            compiler_params=pltpu.CompilerParams(
                dimension_semantics=("parallel",),
                vmem_limit_bytes=vmem_limit),
            cost_estimate=pl.CostEstimate(
                flops=int(flops),
                transcendentals=int(transcendentals),
                bytes_accessed=int(bytes_accessed)),
        )

    try:
        # Grid-invariant weights only need one VMEM buffer (halves weight VMEM).
        return build(single_buffer_weights=True)(x, *ordered)
    except Exception:
        # pl.Buffered(1) not supported by this JAX build: fall back to default
        # (double-buffered) weight blocks; numerics are identical.
        return build(single_buffer_weights=False)(x, *ordered)


def reference_forward(x, params, num_heads):
    """Pure-JAX f32 reference mirroring the PyTorch module (unfused weights)."""
    B, S, D = x.shape
    H = params["w_out"].shape[0]
    hd = H // num_heads

    def ln(t, g, b, eps=1e-5):
        mu = t.mean(-1, keepdims=True)
        var = ((t - mu) ** 2).mean(-1, keepdims=True)
        return (t - mu) / jnp.sqrt(var + eps) * g + b

    with jax.default_matmul_precision("highest"):
        qkv = x @ params["w_qkv"] + params["b_qkv"]
        q, k, v = qkv[..., :H], qkv[..., H:2 * H], qkv[..., 2 * H:]
        w_in, b_in = params["w_in"], params["b_in"]
        qp = q @ w_in[:, :H] + b_in[:, :H]
        kp = k @ w_in[:, H:2 * H] + b_in[:, H:2 * H]
        vp = v @ w_in[:, 2 * H:] + b_in[:, 2 * H:]

        def heads(t):
            return t.reshape(B, S, num_heads, hd).transpose(0, 2, 1, 3)

        qh, kh, vh = heads(qp), heads(kp), heads(vp)
        s = jnp.einsum("bhqd,bhkd->bhqk", qh, kh) / (hd ** 0.5)
        p = jax.nn.softmax(s, axis=-1)
        ctx = jnp.einsum("bhqk,bhkd->bhqd", p, vh)
        ctx = ctx.transpose(0, 2, 1, 3).reshape(B, S, H)
        attn = ctx @ params["w_out"] + params["b_out"]

        y1 = ln(x + attn, params["ln1_g"], params["ln1_b"])
        h1 = jax.nn.relu(y1 @ params["w_ffn1"] + params["b_ffn1"])
        h2 = h1 @ params["w_ffn2"] + params["b_ffn2"]
        return ln(y1 + h2, params["ln2_g"], params["ln2_b"])


if __name__ == "__main__":
    # Small deterministic config matching the module defaults:
    # input_dim = hidden_dim = 64, num_heads = 8 (head_dim = 8), batch = 2, seq = 8.
    B, S, D = 2, 8, 64
    H, num_heads = 64, 8

    key = jax.random.PRNGKey(0)
    ks = jax.random.split(key, 12)

    def rnd(k, shape, scale):
        return jax.random.normal(k, shape, jnp.float32) * scale

    x = jax.random.normal(ks[0], (B, S, D), jnp.float32)
    params = {
        "w_qkv":  rnd(ks[1], (D, 3 * H), D ** -0.5),
        "b_qkv":  rnd(ks[2], (1, 3 * H), 0.02),
        "w_in":   rnd(ks[3], (H, 3 * H), H ** -0.5),
        "b_in":   rnd(ks[4], (1, 3 * H), 0.02),
        "w_out":  rnd(ks[5], (H, H), H ** -0.5),
        "b_out":  rnd(ks[6], (1, H), 0.02),
        "ln1_g":  jnp.ones((1, H), jnp.float32),
        "ln1_b":  jnp.zeros((1, H), jnp.float32),
        "w_ffn1": rnd(ks[7], (H, 4 * H), H ** -0.5),
        "b_ffn1": rnd(ks[8], (1, 4 * H), 0.02),
        "w_ffn2": rnd(ks[9], (4 * H, H), (4 * H) ** -0.5),
        "b_ffn2": rnd(ks[10], (1, H), 0.02),
        "ln2_g":  jnp.ones((1, H), jnp.float32),
        "ln2_b":  jnp.zeros((1, H), jnp.float32),
    }

    out = regular_transformer_layer(x, params, num_heads=num_heads)
    out = jax.block_until_ready(out)

    ref = reference_forward(x, params, num_heads)
    assert out.shape == (B, S, H)
    assert out.dtype == jnp.float32
    # Tolerance covers bf16 MXU operands (f32 accumulation) vs. the f32
    # HIGHEST-precision XLA reference.
    err = float(jnp.max(jnp.abs(out - ref)))
    assert jnp.allclose(out, ref, atol=5e-2, rtol=5e-2), (
        f"mismatch vs reference, max abs err = {err}")
    print("KERNEL_OK")
</pallas_src>

<mosaic_0001>
module attributes {stable_mosaic.version = 11 : i64} {
  func.func @transformer_layer_kernel(%arg0: i32, %arg1: memref<2x8x64xf32, #tpu.memory_space<vmem>>, %arg2: memref<64x192xbf16, #tpu.memory_space<vmem>>, %arg3: memref<1x192xf32, #tpu.memory_space<vmem>>, %arg4: memref<64x64xbf16, #tpu.memory_space<vmem>>, %arg5: memref<1x64xf32, #tpu.memory_space<vmem>>, %arg6: memref<1x64xf32, #tpu.memory_space<vmem>>, %arg7: memref<1x64xf32, #tpu.memory_space<vmem>>, %arg8: memref<64x256xbf16, #tpu.memory_space<vmem>>, %arg9: memref<1x256xf32, #tpu.memory_space<vmem>>, %arg10: memref<256x64xbf16, #tpu.memory_space<vmem>>, %arg11: memref<1x64xf32, #tpu.memory_space<vmem>>, %arg12: memref<1x64xf32, #tpu.memory_space<vmem>>, %arg13: memref<1x64xf32, #tpu.memory_space<vmem>>, %arg14: memref<2x8x64xf32, #tpu.memory_space<vmem>>) attributes {dimension_semantics = [#tpu.dimension_semantics<parallel>], iteration_bounds = array<i64: 1>, scalar_prefetch = 0 : i64, scratch_operands = 0 : i64, tpu.core_type = #tpu.core_type<tc>, window_params = [{transform_indices = @transform_0, window_bounds = array<i64: 2, 8, 64>}, {pipeline_mode = #tpu.pipeline_mode<synchronous>, transform_indices = @transform_1, window_bounds = array<i64: 64, 192>}, {pipeline_mode = #tpu.pipeline_mode<synchronous>, transform_indices = @transform_2, window_bounds = array<i64: 1, 192>}, {pipeline_mode = #tpu.pipeline_mode<synchronous>, transform_indices = @transform_3, window_bounds = array<i64: 64, 64>}, {pipeline_mode = #tpu.pipeline_mode<synchronous>, transform_indices = @transform_4, window_bounds = array<i64: 1, 64>}, {pipeline_mode = #tpu.pipeline_mode<synchronous>, transform_indices = @transform_5, window_bounds = array<i64: 1, 64>}, {pipeline_mode = #tpu.pipeline_mode<synchronous>, transform_indices = @transform_6, window_bounds = array<i64: 1, 64>}, {pipeline_mode = #tpu.pipeline_mode<synchronous>, transform_indices = @transform_7, window_bounds = array<i64: 64, 256>}, {pipeline_mode = #tpu.pipeline_mode<synchronous>, transform_indices = @transform_8, window_bounds = array<i64: 1, 256>}, {pipeline_mode = #tpu.pipeline_mode<synchronous>, transform_indices = @transform_9, window_bounds = array<i64: 256, 64>}, {pipeline_mode = #tpu.pipeline_mode<synchronous>, transform_indices = @transform_10, window_bounds = array<i64: 1, 64>}, {pipeline_mode = #tpu.pipeline_mode<synchronous>, transform_indices = @transform_11, window_bounds = array<i64: 1, 64>}, {pipeline_mode = #tpu.pipeline_mode<synchronous>, transform_indices = @transform_12, window_bounds = array<i64: 1, 64>}, {transform_indices = @transform_13, window_bounds = array<i64: 2, 8, 64>}]} {
    %c0 = arith.constant 0 : index
    %c0_0 = arith.constant 0 : index
    %c0_1 = arith.constant 0 : index
    %0 = vector.load %arg1[%c0, %c0_0, %c0_1] : memref<2x8x64xf32, #tpu.memory_space<vmem>>, vector<2x8x64xf32>
    %1 = vector.shape_cast %0 : vector<2x8x64xf32> to vector<16x64xf32>
    %2 = arith.truncf %1 : vector<16x64xf32> to vector<16x64xbf16>
    %c0_2 = arith.constant 0 : index
    %c0_3 = arith.constant 0 : index
    %3 = vector.load %arg2[%c0_2, %c0_3] : memref<64x192xbf16, #tpu.memory_space<vmem>>, vector<64x192xbf16>
    %cst = arith.constant dense<0.000000e+00> : vector<16x192xf32>
    %4 = tpu.matmul %2, %3, %cst {dimension_numbers = #tpu.dot_dimension_numbers<[1], [0], [0], [1], [0, 0, 1, 1], [], []>} : vector<16x64xbf16>, vector<64x192xbf16>, vector<16x192xf32> -> vector<16x192xf32>
    %c0_4 = arith.constant 0 : index
    %c0_5 = arith.constant 0 : index
    %5 = vector.load %arg3[%c0_4, %c0_5] : memref<1x192xf32, #tpu.memory_space<vmem>>, vector<1x192xf32>
    %6 = vector.broadcast %5 : vector<1x192xf32> to vector<16x192xf32>
    %7 = arith.addf %4, %6 : vector<16x192xf32>
    %8 = vector.extract_strided_slice %7 {offsets = [0, 0], sizes = [16, 64], strides = [1, 1]} : vector<16x192xf32> to vector<16x64xf32>
    %9 = vector.shape_cast %8 : vector<16x64xf32> to vector<2x8x64xf32>
    %10 = vector.extract_strided_slice %7 {offsets = [0, 64], sizes = [16, 64], strides = [1, 1]} : vector<16x192xf32> to vector<16x64xf32>
    %11 = vector.shape_cast %10 : vector<16x64xf32> to vector<2x8x64xf32>
    %12 = vector.extract_strided_slice %7 {offsets = [0, 128], sizes = [16, 64], strides = [1, 1]} : vector<16x192xf32> to vector<16x64xf32>
    %13 = vector.shape_cast %12 : vector<16x64xf32> to vector<2x8x64xf32>
    %14 = tpu.transpose %11, [0, 2, 1] : vector<2x8x64xf32> -> vector<2x64x8xf32>
    %15 = arith.truncf %14 : vector<2x64x8xf32> to vector<2x64x8xbf16>
    %16 = arith.truncf %13 : vector<2x8x64xf32> to vector<2x8x64xbf16>
    %17 = tpu.iota {dimensions = array<i32: 2>} : vector<2x8x64xi32>
    %cst_6 = arith.constant 0.000000e+00 : f32
    %18 = vector.broadcast %cst_6 : f32 to vector<2x8x64xf32>
    %c0_i32 = arith.constant 0 : i32
    %c8_i32 = arith.constant 8 : i32
    %19 = arith.addi %c0_i32, %c8_i32 : i32
    %c1_i32 = arith.constant 1 : i32
    %20 = scf.for %arg15 = %c0_i32 to %19 step %c1_i32 iter_args(%arg16 = %18) -> (vector<2x8x64xf32>)  : i32 {
      %c8_i32_45 = arith.constant 8 : i32
      %90 = arith.muli %arg15, %c8_i32_45 : i32
      %91 = vector.broadcast %90 : i32 to vector<2x8x64xi32>
      %92 = arith.cmpi sge, %17, %91 : vector<2x8x64xi32>
      %c8_i32_46 = arith.constant 8 : i32
      %93 = arith.addi %90, %c8_i32_46 : i32
      %94 = vector.broadcast %93 : i32 to vector<2x8x64xi32>
      %95 = arith.cmpi slt, %17, %94 : vector<2x8x64xi32>
      %96 = arith.andi %92, %95 : vector<2x8x64xi1>
      %cst_47 = arith.constant 0.000000e+00 : f32
      %97 = vector.broadcast %cst_47 : f32 to vector<2x8x64xf32>
      %98 = arith.select %96, %9, %97 : vector<2x8x64xi1>, vector<2x8x64xf32>
      %99 = arith.truncf %98 : vector<2x8x64xf32> to vector<2x8x64xbf16>
      "tpu.trace_start"() <{level = 10 : i32, message = "gqd,gdk->gqk"}> : () -> ()
      %cst_48 = arith.constant dense<0.000000e+00> : vector<2x8x8xf32>
      %100 = tpu.matmul %99, %15, %cst_48 {dimension_numbers = #tpu.dot_dimension_numbers<[2], [1], [1], [2], [0, 0, 0, 1, 1, 2], [0], [0]>} : vector<2x8x64xbf16>, vector<2x64x8xbf16>, vector<2x8x8xf32> -> vector<2x8x8xf32>
      "tpu.trace_stop"() : () -> ()
      %cst_49 = arith.constant dense<0xFF800000> : vector<2x8xf32>
      %101 = vector.multi_reduction <maximumf>, %100, %cst_49 [2] : vector<2x8x8xf32> to vector<2x8xf32>
      %102 = vector.shape_cast %101 : vector<2x8xf32> to vector<2x8x1xf32>
      %103 = vector.broadcast %102 : vector<2x8x1xf32> to vector<2x8x8xf32>
      %104 = arith.subf %100, %103 : vector<2x8x8xf32>
      %105 = math.exp %104 : vector<2x8x8xf32>
      %cst_50 = arith.constant dense<0.000000e+00> : vector<2x8xf32>
      %106 = vector.multi_reduction <add>, %105, %cst_50 [2] : vector<2x8x8xf32> to vector<2x8xf32>
      %107 = vector.shape_cast %106 : vector<2x8xf32> to vector<2x8x1xf32>
      %108 = tpu.reciprocal %107 {approx = true} : vector<2x8x1xf32> -> vector<2x8x1xf32>
      %109 = arith.truncf %105 : vector<2x8x8xf32> to vector<2x8x8xbf16>
      "tpu.trace_start"() <{level = 10 : i32, message = "gqk,gkd->gqd"}> : () -> ()
      %cst_51 = arith.constant dense<0.000000e+00> : vector<2x8x64xf32>
      %110 = tpu.matmul %109, %16, %cst_51 {dimension_numbers = #tpu.dot_dimension_numbers<[2], [1], [1], [2], [0, 0, 0, 1, 1, 2], [0], [0]>} : vector<2x8x8xbf16>, vector<2x8x64xbf16>, vector<2x8x64xf32> -> vector<2x8x64xf32>
      "tpu.trace_stop"() : () -> ()
      %111 = vector.broadcast %108 : vector<2x8x1xf32> to vector<2x8x64xf32>
      %112 = arith.mulf %110, %111 : vector<2x8x64xf32>
      %cst_52 = arith.constant 0.000000e+00 : f32
      %113 = vector.broadcast %cst_52 : f32 to vector<2x8x64xf32>
      %114 = arith.select %96, %112, %113 : vector<2x8x64xi1>, vector<2x8x64xf32>
      %115 = arith.addf %arg16, %114 : vector<2x8x64xf32>
      scf.yield %115 : vector<2x8x64xf32>
    }
    %c8_i32_7 = arith.constant 8 : i32
    %21 = vector.shape_cast %20 : vector<2x8x64xf32> to vector<16x64xf32>
    %22 = arith.truncf %21 : vector<16x64xf32> to vector<16x64xbf16>
    %c0_8 = arith.constant 0 : index
    %c0_9 = arith.constant 0 : index
    %23 = vector.load %arg4[%c0_8, %c0_9] : memref<64x64xbf16, #tpu.memory_space<vmem>>, vector<64x64xbf16>
    %cst_10 = arith.constant dense<0.000000e+00> : vector<16x64xf32>
    %24 = tpu.matmul %22, %23, %cst_10 {dimension_numbers = #tpu.dot_dimension_numbers<[1], [0], [0], [1], [0, 0, 1, 1], [], []>} : vector<16x64xbf16>, vector<64x64xbf16>, vector<16x64xf32> -> vector<16x64xf32>
    %c0_11 = arith.constant 0 : index
    %c0_12 = arith.constant 0 : index
    %25 = vector.load %arg5[%c0_11, %c0_12] : memref<1x64xf32, #tpu.memory_space<vmem>>, vector<1x64xf32>
    %26 = vector.broadcast %25 : vector<1x64xf32> to vector<16x64xf32>
    %27 = arith.addf %24, %26 : vector<16x64xf32>
    %28 = arith.addf %1, %27 : vector<16x64xf32>
    %c0_13 = arith.constant 0 : index
    %c0_14 = arith.constant 0 : index
    %29 = vector.load %arg6[%c0_13, %c0_14] : memref<1x64xf32, #tpu.memory_space<vmem>>, vector<1x64xf32>
    %c0_15 = arith.constant 0 : index
    %c0_16 = arith.constant 0 : index
    %30 = vector.load %arg7[%c0_15, %c0_16] : memref<1x64xf32, #tpu.memory_space<vmem>>, vector<1x64xf32>
    %cst_17 = arith.constant dense<0.000000e+00> : vector<16xf32>
    %31 = vector.multi_reduction <add>, %28, %cst_17 [1] : vector<16x64xf32> to vector<16xf32>
    %32 = vector.shape_cast %31 : vector<16xf32> to vector<16x1xf32>
    %cst_18 = arith.constant 6.400000e+01 : f32
    %33 = vector.broadcast %cst_18 : f32 to vector<16x1xf32>
    %34 = arith.divf %32, %33 : vector<16x1xf32>
    %35 = vector.broadcast %34 : vector<16x1xf32> to vector<16x64xf32>
    %36 = arith.subf %28, %35 : vector<16x64xf32>
    %37 = arith.mulf %36, %36 : vector<16x64xf32>
    %cst_19 = arith.constant dense<0.000000e+00> : vector<16xf32>
    %38 = vector.multi_reduction <add>, %37, %cst_19 [1] : vector<16x64xf32> to vector<16xf32>
    %39 = vector.shape_cast %38 : vector<16xf32> to vector<16x1xf32>
    %cst_20 = arith.constant 6.400000e+01 : f32
    %40 = vector.broadcast %cst_20 : f32 to vector<16x1xf32>
    %41 = arith.divf %39, %40 : vector<16x1xf32>
    %cst_21 = arith.constant 9.99999974E-6 : f32
    %42 = vector.broadcast %cst_21 : f32 to vector<16x1xf32>
    %43 = arith.addf %41, %42 : vector<16x1xf32>
    %44 = math.rsqrt %43 : vector<16x1xf32>
    %45 = vector.broadcast %44 : vector<16x1xf32> to vector<16x64xf32>
    %46 = arith.mulf %36, %45 : vector<16x64xf32>
    %47 = vector.broadcast %29 : vector<1x64xf32> to vector<16x64xf32>
    %48 = arith.mulf %46, %47 : vector<16x64xf32>
    %49 = vector.broadcast %30 : vector<1x64xf32> to vector<16x64xf32>
    %50 = arith.addf %48, %49 : vector<16x64xf32>
    %51 = arith.truncf %50 : vector<16x64xf32> to vector<16x64xbf16>
    %c0_22 = arith.constant 0 : index
    %c0_23 = arith.constant 0 : index
    %52 = vector.load %arg8[%c0_22, %c0_23] : memref<64x256xbf16, #tpu.memory_space<vmem>>, vector<64x256xbf16>
    %cst_24 = arith.constant dense<0.000000e+00> : vector<16x256xf32>
    %53 = tpu.matmul %51, %52, %cst_24 {dimension_numbers = #tpu.dot_dimension_numbers<[1], [0], [0], [1], [0, 0, 1, 1], [], []>} : vector<16x64xbf16>, vector<64x256xbf16>, vector<16x256xf32> -> vector<16x256xf32>
    %c0_25 = arith.constant 0 : index
    %c0_26 = arith.constant 0 : index
    %54 = vector.load %arg9[%c0_25, %c0_26] : memref<1x256xf32, #tpu.memory_space<vmem>>, vector<1x256xf32>
    %55 = vector.broadcast %54 : vector<1x256xf32> to vector<16x256xf32>
    %56 = arith.addf %53, %55 : vector<16x256xf32>
    %cst_27 = arith.constant 0.000000e+00 : f32
    %57 = vector.broadcast %cst_27 : f32 to vector<16x256xf32>
    %58 = arith.maximumf %56, %57 : vector<16x256xf32>
    %59 = arith.truncf %58 : vector<16x256xf32> to vector<16x256xbf16>
    %c0_28 = arith.constant 0 : index
    %c0_29 = arith.constant 0 : index
    %60 = vector.load %arg10[%c0_28, %c0_29] : memref<256x64xbf16, #tpu.memory_space<vmem>>, vector<256x64xbf16>
    %cst_30 = arith.constant dense<0.000000e+00> : vector<16x64xf32>
    %61 = tpu.matmul %59, %60, %cst_30 {dimension_numbers = #tpu.dot_dimension_numbers<[1], [0], [0], [1], [0, 0, 1, 1], [], []>} : vector<16x256xbf16>, vector<256x64xbf16>, vector<16x64xf32> -> vector<16x64xf32>
    %c0_31 = arith.constant 0 : index
    %c0_32 = arith.constant 0 : index
    %62 = vector.load %arg11[%c0_31, %c0_32] : memref<1x64xf32, #tpu.memory_space<vmem>>, vector<1x64xf32>
    %63 = vector.broadcast %62 : vector<1x64xf32> to vector<16x64xf32>
    %64 = arith.addf %61, %63 : vector<16x64xf32>
    %65 = arith.addf %50, %64 : vector<16x64xf32>
    %c0_33 = arith.constant 0 : index
    %c0_34 = arith.constant 0 : index
    %66 = vector.load %arg12[%c0_33, %c0_34] : memref<1x64xf32, #tpu.memory_space<vmem>>, vector<1x64xf32>
    %c0_35 = arith.constant 0 : index
    %c0_36 = arith.constant 0 : index
    %67 = vector.load %arg13[%c0_35, %c0_36] : memref<1x64xf32, #tpu.memory_space<vmem>>, vector<1x64xf32>
    %cst_37 = arith.constant dense<0.000000e+00> : vector<16xf32>
    %68 = vector.multi_reduction <add>, %65, %cst_37 [1] : vector<16x64xf32> to vector<16xf32>
    %69 = vector.shape_cast %68 : vector<16xf32> to vector<16x1xf32>
    %cst_38 = arith.constant 6.400000e+01 : f32
    %70 = vector.broadcast %cst_38 : f32 to vector<16x1xf32>
    %71 = arith.divf %69, %70 : vector<16x1xf32>
    %72 = vector.broadcast %71 : vector<16x1xf32> to vector<16x64xf32>
    %73 = arith.subf %65, %72 : vector<16x64xf32>
    %74 = arith.mulf %73, %73 : vector<16x64xf32>
    %cst_39 = arith.constant dense<0.000000e+00> : vector<16xf32>
    %75 = vector.multi_reduction <add>, %74, %cst_39 [1] : vector<16x64xf32> to vector<16xf32>
    %76 = vector.shape_cast %75 : vector<16xf32> to vector<16x1xf32>
    %cst_40 = arith.constant 6.400000e+01 : f32
    %77 = vector.broadcast %cst_40 : f32 to vector<16x1xf32>
    %78 = arith.divf %76, %77 : vector<16x1xf32>
    %cst_41 = arith.constant 9.99999974E-6 : f32
    %79 = vector.broadcast %cst_41 : f32 to vector<16x1xf32>
    %80 = arith.addf %78, %79 : vector<16x1xf32>
    %81 = math.rsqrt %80 : vector<16x1xf32>
    %82 = vector.broadcast %81 : vector<16x1xf32> to vector<16x64xf32>
    %83 = arith.mulf %73, %82 : vector<16x64xf32>
    %84 = vector.broadcast %66 : vector<1x64xf32> to vector<16x64xf32>
    %85 = arith.mulf %83, %84 : vector<16x64xf32>
    %86 = vector.broadcast %67 : vector<1x64xf32> to vector<16x64xf32>
    %87 = arith.addf %85, %86 : vector<16x64xf32>
    %88 = vector.shape_cast %87 : vector<16x64xf32> to vector<2x8x64xf32>
    %c0_42 = arith.constant 0 : index
    %c0_43 = arith.constant 0 : index
    %c0_44 = arith.constant 0 : index
    %89 = vector.load %arg14[%c0_42, %c0_43, %c0_44] : memref<2x8x64xf32, #tpu.memory_space<vmem>>, vector<2x8x64xf32>
    tpu.vector_store %arg14[%c0_42, %c0_43, %c0_44], %88 {strides = array<i32>} : memref<2x8x64xf32, #tpu.memory_space<vmem>>, vector<2x8x64xf32>,
    return
  }
  func.func @transform_0(%arg0: i32) -> (i32, i32, i32) {
    %c0_i32 = arith.constant 0 : i32
    %c0_i32_0 = arith.constant 0 : i32
    %c0_i32_1 = arith.constant 0 : i32
    return %arg0, %c0_i32, %c0_i32_0 : i32, i32, i32
  }
  func.func @transform_1(%arg0: i32) -> (i32, i32) {
    %c0_i32 = arith.constant 0 : i32
    %c0_i32_0 = arith.constant 0 : i32
    %c0_i32_1 = arith.constant 0 : i32
    return %c0_i32, %c0_i32_0 : i32, i32
  }
  func.func @transform_2(%arg0: i32) -> (i32, i32) {
    %c0_i32 = arith.constant 0 : i32
    %c0_i32_0 = arith.constant 0 : i32
    %c0_i32_1 = arith.constant 0 : i32
    return %c0_i32, %c0_i32_0 : i32, i32
  }
  func.func @transform_3(%arg0: i32) -> (i32, i32) {
    %c0_i32 = arith.constant 0 : i32
    %c0_i32_0 = arith.constant 0 : i32
    %c0_i32_1 = arith.constant 0 : i32
    return %c0_i32, %c0_i32_0 : i32, i32
  }
  func.func @transform_4(%arg0: i32) -> (i32, i32) {
    %c0_i32 = arith.constant 0 : i32
    %c0_i32_0 = arith.constant 0 : i32
    %c0_i32_1 = arith.constant 0 : i32
    return %c0_i32, %c0_i32_0 : i32, i32
  }
  func.func @transform_5(%arg0: i32) -> (i32, i32) {
    %c0_i32 = arith.constant 0 : i32
    %c0_i32_0 = arith.constant 0 : i32
    %c0_i32_1 = arith.constant 0 : i32
    return %c0_i32, %c0_i32_0 : i32, i32
  }
  func.func @transform_6(%arg0: i32) -> (i32, i32) {
    %c0_i32 = arith.constant 0 : i32
    %c0_i32_0 = arith.constant 0 : i32
    %c0_i32_1 = arith.constant 0 : i32
    return %c0_i32, %c0_i32_0 : i32, i32
  }
  func.func @transform_7(%arg0: i32) -> (i32, i32) {
    %c0_i32 = arith.constant 0 : i32
    %c0_i32_0 = arith.constant 0 : i32
    %c0_i32_1 = arith.constant 0 : i32
    return %c0_i32, %c0_i32_0 : i32, i32
  }
  func.func @transform_8(%arg0: i32) -> (i32, i32) {
    %c0_i32 = arith.constant 0 : i32
    %c0_i32_0 = arith.constant 0 : i32
    %c0_i32_1 = arith.constant 0 : i32
    return %c0_i32, %c0_i32_0 : i32, i32
  }
  func.func @transform_9(%arg0: i32) -> (i32, i32) {
    %c0_i32 = arith.constant 0 : i32
    %c0_i32_0 = arith.constant 0 : i32
    %c0_i32_1 = arith.constant 0 : i32
    return %c0_i32, %c0_i32_0 : i32, i32
  }
  func.func @transform_10(%arg0: i32) -> (i32, i32) {
    %c0_i32 = arith.constant 0 : i32
    %c0_i32_0 = arith.constant 0 : i32
    %c0_i32_1 = arith.constant 0 : i32
    return %c0_i32, %c0_i32_0 : i32, i32
  }
  func.func @transform_11(%arg0: i32) -> (i32, i32) {
    %c0_i32 = arith.constant 0 : i32
    %c0_i32_0 = arith.constant 0 : i32
    %c0_i32_1 = arith.constant 0 : i32
    return %c0_i32, %c0_i32_0 : i32, i32
  }
  func.func @transform_12(%arg0: i32) -> (i32, i32) {
    %c0_i32 = arith.constant 0 : i32
    %c0_i32_0 = arith.constant 0 : i32
    %c0_i32_1 = arith.constant 0 : i32
    return %c0_i32, %c0_i32_0 : i32, i32
  }
  func.func @transform_13(%arg0: i32) -> (i32, i32, i32) {
    %c0_i32 = arith.constant 0 : i32
    %c0_i32_0 = arith.constant 0 : i32
    %c0_i32_1 = arith.constant 0 : i32
    return %arg0, %c0_i32, %c0_i32_0 : i32, i32, i32
  }
}

module attributes {stable_mosaic.version = 11 : i64} {
  func.func @transformer_layer_kernel(%arg0: i32, %arg1: memref<2x8x64xf32, #tpu.memory_space<vmem>>, %arg2: memref<64x192xbf16, #tpu.memory_space<vmem>>, %arg3: memref<1x192xf32, #tpu.memory_space<vmem>>, %arg4: memref<64x64xbf16, #tpu.memory_space<vmem>>, %arg5: memref<1x64xf32, #tpu.memory_space<vmem>>, %arg6: memref<1x64xf32, #tpu.memory_space<vmem>>, %arg7: memref<1x64xf32, #tpu.memory_space<vmem>>, %arg8: memref<64x256xbf16, #tpu.memory_space<vmem>>, %arg9: memref<1x256xf32, #tpu.memory_space<vmem>>, %arg10: memref<256x64xbf16, #tpu.memory_space<vmem>>, %arg11: memref<1x64xf32, #tpu.memory_space<vmem>>, %arg12: memref<1x64xf32, #tpu.memory_space<vmem>>, %arg13: memref<1x64xf32, #tpu.memory_space<vmem>>, %arg14: memref<2x8x64xf32, #tpu.memory_space<vmem>>) attributes {dimension_semantics = [#tpu.dimension_semantics<parallel>], iteration_bounds = array<i64: 1>, scalar_prefetch = 0 : i64, scratch_operands = 0 : i64, tpu.core_type = #tpu.core_type<tc>, window_params = [{transform_indices = @transform_0, window_bounds = array<i64: 2, 8, 64>}, {pipeline_mode = #tpu.pipeline_mode<synchronous>, transform_indices = @transform_1, window_bounds = array<i64: 64, 192>}, {pipeline_mode = #tpu.pipeline_mode<synchronous>, transform_indices = @transform_2, window_bounds = array<i64: 1, 192>}, {pipeline_mode = #tpu.pipeline_mode<synchronous>, transform_indices = @transform_3, window_bounds = array<i64: 64, 64>}, {pipeline_mode = #tpu.pipeline_mode<synchronous>, transform_indices = @transform_4, window_bounds = array<i64: 1, 64>}, {pipeline_mode = #tpu.pipeline_mode<synchronous>, transform_indices = @transform_5, window_bounds = array<i64: 1, 64>}, {pipeline_mode = #tpu.pipeline_mode<synchronous>, transform_indices = @transform_6, window_bounds = array<i64: 1, 64>}, {pipeline_mode = #tpu.pipeline_mode<synchronous>, transform_indices = @transform_7, window_bounds = array<i64: 64, 256>}, {pipeline_mode = #tpu.pipeline_mode<synchronous>, transform_indices = @transform_8, window_bounds = array<i64: 1, 256>}, {pipeline_mode = #tpu.pipeline_mode<synchronous>, transform_indices = @transform_9, window_bounds = array<i64: 256, 64>}, {pipeline_mode = #tpu.pipeline_mode<synchronous>, transform_indices = @transform_10, window_bounds = array<i64: 1, 64>}, {pipeline_mode = #tpu.pipeline_mode<synchronous>, transform_indices = @transform_11, window_bounds = array<i64: 1, 64>}, {pipeline_mode = #tpu.pipeline_mode<synchronous>, transform_indices = @transform_12, window_bounds = array<i64: 1, 64>}, {transform_indices = @transform_13, window_bounds = array<i64: 2, 8, 64>}]} {
    %c0 = arith.constant 0 : index
    %c0_0 = arith.constant 0 : index
    %c0_1 = arith.constant 0 : index
    %0 = vector.load %arg1[%c0, %c0_0, %c0_1] : memref<2x8x64xf32, #tpu.memory_space<vmem>>, vector<2x8x64xf32>
    %1 = vector.shape_cast %0 : vector<2x8x64xf32> to vector<16x64xf32>
    %2 = arith.truncf %1 : vector<16x64xf32> to vector<16x64xbf16>
    %c0_2 = arith.constant 0 : index
    %c0_3 = arith.constant 0 : index
    %3 = vector.load %arg2[%c0_2, %c0_3] : memref<64x192xbf16, #tpu.memory_space<vmem>>, vector<64x192xbf16>
    %cst = arith.constant dense<0.000000e+00> : vector<16x192xf32>
    %4 = tpu.matmul %2, %3, %cst {dimension_numbers = #tpu.dot_dimension_numbers<[1], [0], [0], [1], [0, 0, 1, 1], [], []>} : vector<16x64xbf16>, vector<64x192xbf16>, vector<16x192xf32> -> vector<16x192xf32>
    %c0_4 = arith.constant 0 : index
    %c0_5 = arith.constant 0 : index
    %5 = vector.load %arg3[%c0_4, %c0_5] : memref<1x192xf32, #tpu.memory_space<vmem>>, vector<1x192xf32>
    %6 = vector.broadcast %5 : vector<1x192xf32> to vector<16x192xf32>
    %7 = arith.addf %4, %6 : vector<16x192xf32>
    %8 = vector.extract_strided_slice %7 {offsets = [0, 0], sizes = [16, 64], strides = [1, 1]} : vector<16x192xf32> to vector<16x64xf32>
    %9 = vector.shape_cast %8 : vector<16x64xf32> to vector<2x8x64xf32>
    %10 = vector.extract_strided_slice %7 {offsets = [0, 64], sizes = [16, 64], strides = [1, 1]} : vector<16x192xf32> to vector<16x64xf32>
    %11 = vector.shape_cast %10 : vector<16x64xf32> to vector<2x8x64xf32>
    %12 = vector.extract_strided_slice %7 {offsets = [0, 128], sizes = [16, 64], strides = [1, 1]} : vector<16x192xf32> to vector<16x64xf32>
    %13 = vector.shape_cast %12 : vector<16x64xf32> to vector<2x8x64xf32>
    %14 = tpu.transpose %11, [0, 2, 1] : vector<2x8x64xf32> -> vector<2x64x8xf32>
    %15 = arith.truncf %14 : vector<2x64x8xf32> to vector<2x64x8xbf16>
    %16 = arith.truncf %13 : vector<2x8x64xf32> to vector<2x8x64xbf16>
    %17 = tpu.iota {dimensions = array<i32: 2>} : vector<2x8x64xi32>
    %cst_6 = arith.constant 0.000000e+00 : f32
    %18 = vector.broadcast %cst_6 : f32 to vector<2x8x64xf32>
    %c0_i32 = arith.constant 0 : i32
    %c8_i32 = arith.constant 8 : i32
    %19 = arith.addi %c0_i32, %c8_i32 : i32
    %c1_i32 = arith.constant 1 : i32
    %20 = scf.for %arg15 = %c0_i32 to %19 step %c1_i32 iter_args(%arg16 = %18) -> (vector<2x8x64xf32>)  : i32 {
      %c8_i32_45 = arith.constant 8 : i32
      %90 = arith.muli %arg15, %c8_i32_45 : i32
      %91 = vector.broadcast %90 : i32 to vector<2x8x64xi32>
      %92 = arith.cmpi sge, %17, %91 : vector<2x8x64xi32>
      %c8_i32_46 = arith.constant 8 : i32
      %93 = arith.addi %90, %c8_i32_46 : i32
      %94 = vector.broadcast %93 : i32 to vector<2x8x64xi32>
      %95 = arith.cmpi slt, %17, %94 : vector<2x8x64xi32>
      %96 = arith.andi %92, %95 : vector<2x8x64xi1>
      %cst_47 = arith.constant 0.000000e+00 : f32
      %97 = vector.broadcast %cst_47 : f32 to vector<2x8x64xf32>
      %98 = arith.select %96, %9, %97 : vector<2x8x64xi1>, vector<2x8x64xf32>
      %99 = arith.truncf %98 : vector<2x8x64xf32> to vector<2x8x64xbf16>
      "tpu.trace_start"() <{level = 10 : i32, message = "gqd,gdk->gqk"}> : () -> ()
      %cst_48 = arith.constant dense<0.000000e+00> : vector<2x8x8xf32>
      %100 = tpu.matmul %99, %15, %cst_48 {dimension_numbers = #tpu.dot_dimension_numbers<[2], [1], [1], [2], [0, 0, 0, 1, 1, 2], [0], [0]>} : vector<2x8x64xbf16>, vector<2x64x8xbf16>, vector<2x8x8xf32> -> vector<2x8x8xf32>
      "tpu.trace_stop"() : () -> ()
      %cst_49 = arith.constant dense<0xFF800000> : vector<2x8xf32>
      %101 = vector.multi_reduction <maximumf>, %100, %cst_49 [2] : vector<2x8x8xf32> to vector<2x8xf32>
      %102 = vector.shape_cast %101 : vector<2x8xf32> to vector<2x8x1xf32>
      %103 = vector.broadcast %102 : vector<2x8x1xf32> to vector<2x8x8xf32>
      %104 = arith.subf %100, %103 : vector<2x8x8xf32>
      %105 = math.exp %104 : vector<2x8x8xf32>
      %cst_50 = arith.constant dense<0.000000e+00> : vector<2x8xf32>
      %106 = vector.multi_reduction <add>, %105, %cst_50 [2] : vector<2x8x8xf32> to vector<2x8xf32>
      %107 = vector.shape_cast %106 : vector<2x8xf32> to vector<2x8x1xf32>
      %108 = tpu.reciprocal %107 {approx = true} : vector<2x8x1xf32> -> vector<2x8x1xf32>
      %109 = arith.truncf %105 : vector<2x8x8xf32> to vector<2x8x8xbf16>
      "tpu.trace_start"() <{level = 10 : i32, message = "gqk,gkd->gqd"}> : () -> ()
      %cst_51 = arith.constant dense<0.000000e+00> : vector<2x8x64xf32>
      %110 = tpu.matmul %109, %16, %cst_51 {dimension_numbers = #tpu.dot_dimension_numbers<[2], [1], [1], [2], [0, 0, 0, 1, 1, 2], [0], [0]>} : vector<2x8x8xbf16>, vector<2x8x64xbf16>, vector<2x8x64xf32> -> vector<2x8x64xf32>
      "tpu.trace_stop"() : () -> ()
      %111 = vector.broadcast %108 : vector<2x8x1xf32> to vector<2x8x64xf32>
      %112 = arith.mulf %110, %111 : vector<2x8x64xf32>
      %cst_52 = arith.constant 0.000000e+00 : f32
      %113 = vector.broadcast %cst_52 : f32 to vector<2x8x64xf32>
      %114 = arith.select %96, %112, %113 : vector<2x8x64xi1>, vector<2x8x64xf32>
      %115 = arith.addf %arg16, %114 : vector<2x8x64xf32>
      scf.yield %115 : vector<2x8x64xf32>
    }
    %c8_i32_7 = arith.constant 8 : i32
    %21 = vector.shape_cast %20 : vector<2x8x64xf32> to vector<16x64xf32>
    %22 = arith.truncf %21 : vector<16x64xf32> to vector<16x64xbf16>
    %c0_8 = arith.constant 0 : index
    %c0_9 = arith.constant 0 : index
    %23 = vector.load %arg4[%c0_8, %c0_9] : memref<64x64xbf16, #tpu.memory_space<vmem>>, vector<64x64xbf16>
    %cst_10 = arith.constant dense<0.000000e+00> : vector<16x64xf32>
    %24 = tpu.matmul %22, %23, %cst_10 {dimension_numbers = #tpu.dot_dimension_numbers<[1], [0], [0], [1], [0, 0, 1, 1], [], []>} : vector<16x64xbf16>, vector<64x64xbf16>, vector<16x64xf32> -> vector<16x64xf32>
    %c0_11 = arith.constant 0 : index
    %c0_12 = arith.constant 0 : index
    %25 = vector.load %arg5[%c0_11, %c0_12] : memref<1x64xf32, #tpu.memory_space<vmem>>, vector<1x64xf32>
    %26 = vector.broadcast %25 : vector<1x64xf32> to vector<16x64xf32>
    %27 = arith.addf %24, %26 : vector<16x64xf32>
    %28 = arith.addf %1, %27 : vector<16x64xf32>
    %c0_13 = arith.constant 0 : index
    %c0_14 = arith.constant 0 : index
    %29 = vector.load %arg6[%c0_13, %c0_14] : memref<1x64xf32, #tpu.memory_space<vmem>>, vector<1x64xf32>
    %c0_15 = arith.constant 0 : index
    %c0_16 = arith.constant 0 : index
    %30 = vector.load %arg7[%c0_15, %c0_16] : memref<1x64xf32, #tpu.memory_space<vmem>>, vector<1x64xf32>
    %cst_17 = arith.constant dense<0.000000e+00> : vector<16xf32>
    %31 = vector.multi_reduction <add>, %28, %cst_17 [1] : vector<16x64xf32> to vector<16xf32>
    %32 = vector.shape_cast %31 : vector<16xf32> to vector<16x1xf32>
    %cst_18 = arith.constant 6.400000e+01 : f32
    %33 = vector.broadcast %cst_18 : f32 to vector<16x1xf32>
    %34 = arith.divf %32, %33 : vector<16x1xf32>
    %35 = vector.broadcast %34 : vector<16x1xf32> to vector<16x64xf32>
    %36 = arith.subf %28, %35 : vector<16x64xf32>
    %37 = arith.mulf %36, %36 : vector<16x64xf32>
    %cst_19 = arith.constant dense<0.000000e+00> : vector<16xf32>
    %38 = vector.multi_reduction <add>, %37, %cst_19 [1] : vector<16x64xf32> to vector<16xf32>
    %39 = vector.shape_cast %38 : vector<16xf32> to vector<16x1xf32>
    %cst_20 = arith.constant 6.400000e+01 : f32
    %40 = vector.broadcast %cst_20 : f32 to vector<16x1xf32>
    %41 = arith.divf %39, %40 : vector<16x1xf32>
    %cst_21 = arith.constant 9.99999974E-6 : f32
    %42 = vector.broadcast %cst_21 : f32 to vector<16x1xf32>
    %43 = arith.addf %41, %42 : vector<16x1xf32>
    %44 = math.rsqrt %43 : vector<16x1xf32>
    %45 = vector.broadcast %44 : vector<16x1xf32> to vector<16x64xf32>
    %46 = arith.mulf %36, %45 : vector<16x64xf32>
    %47 = vector.broadcast %29 : vector<1x64xf32> to vector<16x64xf32>
    %48 = arith.mulf %46, %47 : vector<16x64xf32>
    %49 = vector.broadcast %30 : vector<1x64xf32> to vector<16x64xf32>
    %50 = arith.addf %48, %49 : vector<16x64xf32>
    %51 = arith.truncf %50 : vector<16x64xf32> to vector<16x64xbf16>
    %c0_22 = arith.constant 0 : index
    %c0_23 = arith.constant 0 : index
    %52 = vector.load %arg8[%c0_22, %c0_23] : memref<64x256xbf16, #tpu.memory_space<vmem>>, vector<64x256xbf16>
    %cst_24 = arith.constant dense<0.000000e+00> : vector<16x256xf32>
    %53 = tpu.matmul %51, %52, %cst_24 {dimension_numbers = #tpu.dot_dimension_numbers<[1], [0], [0], [1], [0, 0, 1, 1], [], []>} : vector<16x64xbf16>, vector<64x256xbf16>, vector<16x256xf32> -> vector<16x256xf32>
    %c0_25 = arith.constant 0 : index
    %c0_26 = arith.constant 0 : index
    %54 = vector.load %arg9[%c0_25, %c0_26] : memref<1x256xf32, #tpu.memory_space<vmem>>, vector<1x256xf32>
    %55 = vector.broadcast %54 : vector<1x256xf32> to vector<16x256xf32>
    %56 = arith.addf %53, %55 : vector<16x256xf32>
    %cst_27 = arith.constant 0.000000e+00 : f32
    %57 = vector.broadcast %cst_27 : f32 to vector<16x256xf32>
    %58 = arith.maximumf %56, %57 : vector<16x256xf32>
    %59 = arith.truncf %58 : vector<16x256xf32> to vector<16x256xbf16>
    %c0_28 = arith.constant 0 : index
    %c0_29 = arith.constant 0 : index
    %60 = vector.load %arg10[%c0_28, %c0_29] : memref<256x64xbf16, #tpu.memory_space<vmem>>, vector<256x64xbf16>
    %cst_30 = arith.constant dense<0.000000e+00> : vector<16x64xf32>
    %61 = tpu.matmul %59, %60, %cst_30 {dimension_numbers = #tpu.dot_dimension_numbers<[1], [0], [0], [1], [0, 0, 1, 1], [], []>} : vector<16x256xbf16>, vector<256x64xbf16>, vector<16x64xf32> -> vector<16x64xf32>
    %c0_31 = arith.constant 0 : index
    %c0_32 = arith.constant 0 : index
    %62 = vector.load %arg11[%c0_31, %c0_32] : memref<1x64xf32, #tpu.memory_space<vmem>>, vector<1x64xf32>
    %63 = vector.broadcast %62 : vector<1x64xf32> to vector<16x64xf32>
    %64 = arith.addf %61, %63 : vector<16x64xf32>
    %65 = arith.addf %50, %64 : vector<16x64xf32>
    %c0_33 = arith.constant 0 : index
    %c0_34 = arith.constant 0 : index
    %66 = vector.load %arg12[%c0_33, %c0_34] : memref<1x64xf32, #tpu.memory_space<vmem>>, vector<1x64xf32>
    %c0_35 = arith.constant 0 : index
    %c0_36 = arith.constant 0 : index
    %67 = vector.load %arg13[%c0_35, %c0_36] : memref<1x64xf32, #tpu.memory_space<vmem>>, vector<1x64xf32>
    %cst_37 = arith.constant dense<0.000000e+00> : vector<16xf32>
    %68 = vector.multi_reduction <add>, %65, %cst_37 [1] : vector<16x64xf32> to vector<16xf32>
    %69 = vector.shape_cast %68 : vector<16xf32> to vector<16x1xf32>
    %cst_38 = arith.constant 6.400000e+01 : f32
    %70 = vector.broadcast %cst_38 : f32 to vector<16x1xf32>
    %71 = arith.divf %69, %70 : vector<16x1xf32>
    %72 = vector.broadcast %71 : vector<16x1xf32> to vector<16x64xf32>
    %73 = arith.subf %65, %72 : vector<16x64xf32>
    %74 = arith.mulf %73, %73 : vector<16x64xf32>
    %cst_39 = arith.constant dense<0.000000e+00> : vector<16xf32>
    %75 = vector.multi_reduction <add>, %74, %cst_39 [1] : vector<16x64xf32> to vector<16xf32>
    %76 = vector.shape_cast %75 : vector<16xf32> to vector<16x1xf32>
    %cst_40 = arith.constant 6.400000e+01 : f32
    %77 = vector.broadcast %cst_40 : f32 to vector<16x1xf32>
    %78 = arith.divf %76, %77 : vector<16x1xf32>
    %cst_41 = arith.constant 9.99999974E-6 : f32
    %79 = vector.broadcast %cst_41 : f32 to vector<16x1xf32>
    %80 = arith.addf %78, %79 : vector<16x1xf32>
    %81 = math.rsqrt %80 : vector<16x1xf32>
    %82 = vector.broadcast %81 : vector<16x1xf32> to vector<16x64xf32>
    %83 = arith.mulf %73, %82 : vector<16x64xf32>
    %84 = vector.broadcast %66 : vector<1x64xf32> to vector<16x64xf32>
    %85 = arith.mulf %83, %84 : vector<16x64xf32>
    %86 = vector.broadcast %67 : vector<1x64xf32> to vector<16x64xf32>
    %87 = arith.addf %85, %86 : vector<16x64xf32>
    %88 = vector.shape_cast %87 : vector<16x64xf32> to vector<2x8x64xf32>
    %c0_42 = arith.constant 0 : index
    %c0_43 = arith.constant 0 : index
    %c0_44 = arith.constant 0 : index
    %89 = vector.load %arg14[%c0_42, %c0_43, %c0_44] : memref<2x8x64xf32, #tpu.memory_space<vmem>>, vector<2x8x64xf32>
    tpu.vector_store %arg14[%c0_42, %c0_43, %c0_44], %88 {strides = array<i32>} : memref<2x8x64xf32, #tpu.memory_space<vmem>>, vector<2x8x64xf32>,
    return
  }
  func.func @transform_0(%arg0: i32) -> (i32, i32, i32) {
    %c0_i32 = arith.constant 0 : i32
    %c0_i32_0 = arith.constant 0 : i32
    %c0_i32_1 = arith.constant 0 : i32
    return %arg0, %c0_i32, %c0_i32_0 : i32, i32, i32
  }
  func.func @transform_1(%arg0: i32) -> (i32, i32) {
    %c0_i32 = arith.constant 0 : i32
    %c0_i32_0 = arith.constant 0 : i32
    %c0_i32_1 = arith.constant 0 : i32
    return %c0_i32, %c0_i32_0 : i32, i32
  }
  func.func @transform_2(%arg0: i32) -> (i32, i32) {
    %c0_i32 = arith.constant 0 : i32
    %c0_i32_0 = arith.constant 0 : i32
    %c0_i32_1 = arith.constant 0 : i32
    return %c0_i32, %c0_i32_0 : i32, i32
  }
  func.func @transform_3(%arg0: i32) -> (i32, i32) {
    %c0_i32 = arith.constant 0 : i32
    %c0_i32_0 = arith.constant 0 : i32
    %c0_i32_1 = arith.constant 0 : i32
    return %c0_i32, %c0_i32_0 : i32, i32
  }
  func.func @transform_4(%arg0: i32) -> (i32, i32) {
    %c0_i32 = arith.constant 0 : i32
    %c0_i32_0 = arith.constant 0 : i32
    %c0_i32_1 = arith.constant 0 : i32
    return %c0_i32, %c0_i32_0 : i32, i32
  }
  func.func @transform_5(%arg0: i32) -> (i32, i32) {
    %c0_i32 = arith.constant 0 : i32
    %c0_i32_0 = arith.constant 0 : i32
    %c0_i32_1 = arith.constant 0 : i32
    return %c0_i32, %c0_i32_0 : i32, i32
  }
  func.func @transform_6(%arg0: i32) -> (i32, i32) {
    %c0_i32 = arith.constant 0 : i32
    %c0_i32_0 = arith.constant 0 : i32
    %c0_i32_1 = arith.constant 0 : i32
    return %c0_i32, %c0_i32_0 : i32, i32
  }
  func.func @transform_7(%arg0: i32) -> (i32, i32) {
    %c0_i32 = arith.constant 0 : i32
    %c0_i32_0 = arith.constant 0 : i32
    %c0_i32_1 = arith.constant 0 : i32
    return %c0_i32, %c0_i32_0 : i32, i32
  }
  func.func @transform_8(%arg0: i32) -> (i32, i32) {
    %c0_i32 = arith.constant 0 : i32
    %c0_i32_0 = arith.constant 0 : i32
    %c0_i32_1 = arith.constant 0 : i32
    return %c0_i32, %c0_i32_0 : i32, i32
  }
  func.func @transform_9(%arg0: i32) -> (i32, i32) {
    %c0_i32 = arith.constant 0 : i32
    %c0_i32_0 = arith.constant 0 : i32
    %c0_i32_1 = arith.constant 0 : i32
    return %c0_i32, %c0_i32_0 : i32, i32
  }
  func.func @transform_10(%arg0: i32) -> (i32, i32) {
    %c0_i32 = arith.constant 0 : i32
    %c0_i32_0 = arith.constant 0 : i32
    %c0_i32_1 = arith.constant 0 : i32
    return %c0_i32, %c0_i32_0 : i32, i32
  }
  func.func @transform_11(%arg0: i32) -> (i32, i32) {
    %c0_i32 = arith.constant 0 : i32
    %c0_i32_0 = arith.constant 0 : i32
    %c0_i32_1 = arith.constant 0 : i32
    return %c0_i32, %c0_i32_0 : i32, i32
  }
  func.func @transform_12(%arg0: i32) -> (i32, i32) {
    %c0_i32 = arith.constant 0 : i32
    %c0_i32_0 = arith.constant 0 : i32
    %c0_i32_1 = arith.constant 0 : i32
    return %c0_i32, %c0_i32_0 : i32, i32
  }
  func.func @transform_13(%arg0: i32) -> (i32, i32, i32) {
    %c0_i32 = arith.constant 0 : i32
    %c0_i32_0 = arith.constant 0 : i32
    %c0_i32_1 = arith.constant 0 : i32
    return %arg0, %c0_i32, %c0_i32_0 : i32, i32, i32
  }
}

</mosaic_0001>

<llo_original>
// kernel: tpu_custom_call.1
$region0: #{tpu_custom_call.1}
  #allocation0 [shape = 'u32[]', space=smem, size = 0x4, offset = 0x4, fixed_abs, tag = 'smem constant byte address 0x4 - core index']
  #allocation1 [shape = 'u32[72,128]{1,0:T(1,128)}', space=vmem, size = 0x9000, scoped, tag = 'internal scratch']
  %s0 = inlined_call_operand.vmem [shape: f32[2,8,64], index: 0, kind: input, shape index: {}]
  %s1 = inlined_call_operand.vmem [shape: bf16[64,192], index: 1, kind: input, shape index: {}]
  %s2 = inlined_call_operand.vmem [shape: f32[1,192], index: 2, kind: input, shape index: {}]
  %s3 = inlined_call_operand.vmem [shape: bf16[64,64], index: 3, kind: input, shape index: {}]
  %s4 = inlined_call_operand.vmem [shape: f32[1,64], index: 4, kind: input, shape index: {}]
  %s5 = inlined_call_operand.vmem [shape: f32[1,64], index: 5, kind: input, shape index: {}]
  %s6 = inlined_call_operand.vmem [shape: f32[1,64], index: 6, kind: input, shape index: {}]
  %s7 = inlined_call_operand.vmem [shape: bf16[64,256], index: 7, kind: input, shape index: {}]
  %s8 = inlined_call_operand.vmem [shape: f32[1,256], index: 8, kind: input, shape index: {}]
  %s9 = inlined_call_operand.vmem [shape: bf16[256,64], index: 9, kind: input, shape index: {}]
  %s10 = inlined_call_operand.vmem [shape: f32[1,64], index: 10, kind: input, shape index: {}]
  %s11 = inlined_call_operand.vmem [shape: f32[1,64], index: 11, kind: input, shape index: {}]
  %s12 = inlined_call_operand.vmem [shape: f32[1,64], index: 12, kind: input, shape index: {}]
  %s13 = inlined_call_operand.hbm [shape: f32[2,8,64], index: 13, kind: output, shape index: {}]
  %s14 = sld [smem:[#allocation0]]
  $region69: #{tpu_custom_call.1} parent=0
    _
  %s16 = ssub.s32 1, %s14
  %s17 = scalar_select 0, %s16, %s14
  $region1: #{tpu_custom_call.1} parent=0
    #allocation2 [shape = 'u8[8192]{0}', space=vmem, size = 0x2000, scoped, tag = 'output window, operand 0, single buffered']
    #allocation3 [shape = 's32[1]{0}', space=sflag, size = 0x4, scoped, tag = 'scoped memory for tpu_custom_call.1']
    %18 = vsyncpa [#allocation3], 0
    // Predicated region
    $region2: #{tpu_custom_call.1} parent=1 // pred_check
      _
    $region3: #{tpu_custom_call.1} parent=1 // pred_check_branch
      %20 = sbr.rel (0) target = $region5
    $region4: #{tpu_custom_call.1} parent=1 // pred_region
      _
    $region5: #{tpu_custom_call.1} parent=1 // pred_fallthru
      _
    // Predicated region
    $region6: #{tpu_custom_call.1} parent=1 // pred_check
      _
    $region7: #{tpu_custom_call.1} parent=1 // pred_check_branch
      %22 = sbr.rel (0) target = $region9
    $region8: #{tpu_custom_call.1} parent=1 // pred_region
      _
    $region9: #{tpu_custom_call.1} parent=1 // pred_fallthru
      _
    // Predicated region
    $region10: #{tpu_custom_call.1} parent=1 // pred_check
      _
    $region11: #{tpu_custom_call.1} parent=1 // pred_check_branch
      %24 = sbr.rel (0) target = $region13
    $region12: #{tpu_custom_call.1} parent=1 // pred_region
      _
    $region13: #{tpu_custom_call.1} parent=1 // pred_fallthru
      _
    // Predicated region
    $region14: #{tpu_custom_call.1} parent=1 // pred_check
      _
    $region15: #{tpu_custom_call.1} parent=1 // pred_check_branch
      %26 = sbr.rel (0) target = $region17
    $region16: #{tpu_custom_call.1} parent=1 // pred_region
      _
    $region17: #{tpu_custom_call.1} parent=1 // pred_fallthru
      _
    // Predicated region
    $region18: #{tpu_custom_call.1} parent=1 // pred_check
      _
    $region19: #{tpu_custom_call.1} parent=1 // pred_check_branch
      %28 = sbr.rel (0) target = $region21
    $region20: #{tpu_custom_call.1} parent=1 // pred_region
      _
    $region21: #{tpu_custom_call.1} parent=1 // pred_fallthru
      _
    // Predicated region
    $region22: #{tpu_custom_call.1} parent=1 // pred_check
      _
    $region23: #{tpu_custom_call.1} parent=1 // pred_check_branch
      %30 = sbr.rel (0) target = $region25
    $region24: #{tpu_custom_call.1} parent=1 // pred_region
      _
    $region25: #{tpu_custom_call.1} parent=1 // pred_fallthru
      _
    // Predicated region
    $region26: #{tpu_custom_call.1} parent=1 // pred_check
      _
    $region27: #{tpu_custom_call.1} parent=1 // pred_check_branch
      %32 = sbr.rel (0) target = $region29
    $region28: #{tpu_custom_call.1} parent=1 // pred_region
      _
    $region29: #{tpu_custom_call.1} parent=1 // pred_fallthru
      _
    // Predicated region
    $region30: #{tpu_custom_call.1} parent=1 // pred_check
      _
    $region31: #{tpu_custom_call.1} parent=1 // pred_check_branch
      %34 = sbr.rel (0) target = $region33
    $region32: #{tpu_custom_call.1} parent=1 // pred_region
      _
    $region33: #{tpu_custom_call.1} parent=1 // pred_fallthru
      _
    // Predicated region
    $region34: #{tpu_custom_call.1} parent=1 // pred_check
      _
    $region35: #{tpu_custom_call.1} parent=1 // pred_check_branch
      %36 = sbr.rel (0) target = $region37
    $region36: #{tpu_custom_call.1} parent=1 // pred_region
      _
    $region37: #{tpu_custom_call.1} parent=1 // pred_fallthru
      _
    // Predicated region
    $region38: #{tpu_custom_call.1} parent=1 // pred_check
      _
    $region39: #{tpu_custom_call.1} parent=1 // pred_check_branch
      %38 = sbr.rel (0) target = $region41
    $region40: #{tpu_custom_call.1} parent=1 // pred_region
      _
    $region41: #{tpu_custom_call.1} parent=1 // pred_fallthru
      _
    // Predicated region
    $region42: #{tpu_custom_call.1} parent=1 // pred_check
      _
    $region43: #{tpu_custom_call.1} parent=1 // pred_check_branch
      %40 = sbr.rel (0) target = $region45
    $region44: #{tpu_custom_call.1} parent=1 // pred_region
      _
    $region45: #{tpu_custom_call.1} parent=1 // pred_fallthru
      _
    // Predicated region
    $region46: #{tpu_custom_call.1} parent=1 // pred_check
      _
    $region47: #{tpu_custom_call.1} parent=1 // pred_check_branch
      %42 = sbr.rel (0) target = $region49
    $region48: #{tpu_custom_call.1} parent=1 // pred_region
      _
    $region49: #{tpu_custom_call.1} parent=1 // pred_fallthru
      _
    // Predicated region
    $region50: #{tpu_custom_call.1} parent=1 // pred_check
      _
    $region51: #{tpu_custom_call.1} parent=1 // pred_check_branch
      %44 = sbr.rel (0) target = $region53
    $region52: #{tpu_custom_call.1} parent=1 // pred_region
      _
    $region53: #{tpu_custom_call.1} parent=1 // pred_fallthru
      _
    %v46 = vld [vmem:[%s0] sm:$0xff]
    %v47 = vld [vmem:[%s0 + $0x8] sm:$0xff]
    %v48 = vpack.c.bf16 %v47, %v46
    %v49 = vld [vmem:[%s1] sm:$0xff]
    %v50 = vld [vmem:[%s1 + $0x8] sm:$0xff]
    %v51 = vld [vmem:[%s1 + $0x10] sm:$0xff]
    %v52 = vld [vmem:[%s1 + $0x18] sm:$0xff]
    %v53 = vld [vmem:[%s1 + $0x20] sm:$0xff]
    %v54 = vld [vmem:[%s1 + $0x28] sm:$0xff]
    %v55 = vld [vmem:[%s1 + $0x30] sm:$0xff]
    %v56 = vld [vmem:[%s1 + $0x38] sm:$0xff]
    %v57 = vld [vmem:[%s2] sm:$0x3]
    %v59 = vperm.slane %v57, 0
    %v60 = vperm.slane %v57, 1
    %v71 = vunpack.c.l.b16 %v49
    %v72 = vunpack.c.h.b16 %v49
    %v73 = vunpack.c.l.b16 %v50
    %v74 = vunpack.c.h.b16 %v50
    %v75 = vunpack.c.l.b16 %v51
    %v76 = vunpack.c.h.b16 %v51
    %v77 = vunpack.c.l.b16 %v52
    %v78 = vunpack.c.h.b16 %v52
    %v79 = vunpack.c.l.b16 %v53
    %v80 = vunpack.c.h.b16 %v53
    %v81 = vunpack.c.l.b16 %v54
    %v82 = vunpack.c.h.b16 %v54
    %v83 = vunpack.c.l.b16 %v55
    %v84 = vunpack.c.h.b16 %v55
    %v85 = vunpack.c.l.b16 %v56
    %v86 = vunpack.c.h.b16 %v56
    %v87 = vpack.c.b16 %v73, %v71
    %v88 = vpack.c.b16 %v74, %v72
    %v89 = vpack.c.b16 %v77, %v75
    %v90 = vpack.c.b16 %v78, %v76
    %v91 = vpack.c.b16 %v81, %v79
    %v92 = vpack.c.b16 %v82, %v80
    %v93 = vpack.c.b16 %v85, %v83
    %v94 = vpack.c.b16 %v86, %v84
    %vm103 = vcmask 523264
    %v105 = vsel %vm103, %v48, 0
    %107 = vmatpush.bf16.msra.mxu0 0
    %108 = vmatpush.bf16.msra.mxu0 0
    %109 = vmatpush.bf16.msra.mxu0 0
    %110 = vmatpush.bf16.msra.mxu0 0
    %111 = vmatpush.bf16.msra.mxu0 %v93
    %112 = vmatpush.bf16.msra.mxu0 %v91
    %113 = vmatpush.bf16.msra.mxu0 %v89
    %114 = vmatpush.bf16.msra.mxu0 %v87
    %115 = vmatmul.bf16.gmra.mxu0 %v105
    %v116 = vpop.f32.mrf.mxu0
    %v117 = vadd.f32 %v59, %v116
    %v118 = vpop.f32.mrf.mxu0
    %v119 = vadd.f32 %v59, %v118
    %120 = vdwg.mxu0
    %121 = vmatpush.bf16.msra.mxu0 0
    %122 = vmatpush.bf16.msra.mxu0 0
    %123 = vmatpush.bf16.msra.mxu0 0
    %124 = vmatpush.bf16.msra.mxu0 0
    %125 = vmatpush.bf16.msra.mxu0 %v94
    %126 = vmatpush.bf16.msra.mxu0 %v92
    %127 = vmatpush.bf16.msra.mxu0 %v90
    %128 = vmatpush.bf16.msra.mxu0 %v88
    %129 = vmatmul.bf16.gmra.mxu0 %v105
    %v130 = vpop.f32.mrf.mxu0
    %v131 = vadd.f32 %v60, %v130
    %v132 = vpop.f32.mrf.mxu0
    %v133 = vadd.f32 %v60, %v132
    %134 = vdwg.mxu0
    %137 = vrot.lane.b32.xlu0 %v117, 64
    %v138 = vpop.permute.xlu0 %137
    %139 = vrot.lane.b32.xlu0 %v119, 64
    %v140 = vpop.permute.xlu0 %139
    %143 = vxpose.xlu0.b32.start [1/16] %v138, 128
    %144 = vxpose.xlu0.b32.cont [2/16] 0.0, 128
    %145 = vxpose.xlu0.b32.cont [3/16] 0.0, 128
    %146 = vxpose.xlu0.b32.cont [4/16] 0.0, 128
    %147 = vxpose.xlu0.b32.cont [5/16] 0.0, 128
    %148 = vxpose.xlu0.b32.cont [6/16] 0.0, 128
    %149 = vxpose.xlu0.b32.cont [7/16] 0.0, 128
    %150 = vxpose.xlu0.b32.cont [8/16] 0.0, 128
    %151 = vxpose.xlu0.b32.cont [9/16] 0.0, 128
    %152 = vxpose.xlu0.b32.cont [10/16] 0.0, 128
    %153 = vxpose.xlu0.b32.cont [11/16] 0.0, 128
    %154 = vxpose.xlu0.b32.cont [12/16] 0.0, 128
    %155 = vxpose.xlu0.b32.cont [13/16] 0.0, 128
    %156 = vxpose.xlu0.b32.cont [14/16] 0.0, 128
    %157 = vxpose.xlu0.b32.cont [15/16] 0.0, 128
    %158 = vxpose.xlu0.b32.end [16/16] 0.0, 128
    %v159 = vpop.trf.xlu0
    %v160 = vpop.trf.xlu0
    %v161 = vpop.trf.xlu0
    %v162 = vpop.trf.xlu0
    %v163 = vpop.trf.xlu0
    %v164 = vpop.trf.xlu0
    %v165 = vpop.trf.xlu0
    %v166 = vpop.trf.xlu0
    %v167 = vpop.trf.xlu0
    %v168 = vpop.trf.xlu0
    %v169 = vpop.trf.xlu0
    %v170 = vpop.trf.xlu0
    %v171 = vpop.trf.xlu0
    %v172 = vpop.trf.xlu0
    %v173 = vpop.trf.xlu0
    %v174 = vpop.trf.xlu0
    %175 = vxpose.xlu0.b32.start [1/16] %v140, 128
    %176 = vxpose.xlu0.b32.cont [2/16] 0.0, 128
    %177 = vxpose.xlu0.b32.cont [3/16] 0.0, 128
    %178 = vxpose.xlu0.b32.cont [4/16] 0.0, 128
    %179 = vxpose.xlu0.b32.cont [5/16] 0.0, 128
    %180 = vxpose.xlu0.b32.cont [6/16] 0.0, 128
    %181 = vxpose.xlu0.b32.cont [7/16] 0.0, 128
    %182 = vxpose.xlu0.b32.cont [8/16] 0.0, 128
    %183 = vxpose.xlu0.b32.cont [9/16] 0.0, 128
    %184 = vxpose.xlu0.b32.cont [10/16] 0.0, 128
    %185 = vxpose.xlu0.b32.cont [11/16] 0.0, 128
    %186 = vxpose.xlu0.b32.cont [12/16] 0.0, 128
    %187 = vxpose.xlu0.b32.cont [13/16] 0.0, 128
    %188 = vxpose.xlu0.b32.cont [14/16] 0.0, 128
    %189 = vxpose.xlu0.b32.cont [15/16] 0.0, 128
    %190 = vxpose.xlu0.b32.end [16/16] 0.0, 128
    %v191 = vpop.trf.xlu0
    %v192 = vpop.trf.xlu0
    %v193 = vpop.trf.xlu0
    %v194 = vpop.trf.xlu0
    %v195 = vpop.trf.xlu0
    %v196 = vpop.trf.xlu0
    %v197 = vpop.trf.xlu0
    %v198 = vpop.trf.xlu0
    %v199 = vpop.trf.xlu0
    %v200 = vpop.trf.xlu0
    %v201 = vpop.trf.xlu0
    %v202 = vpop.trf.xlu0
    %v203 = vpop.trf.xlu0
    %v204 = vpop.trf.xlu0
    %v205 = vpop.trf.xlu0
    %v206 = vpop.trf.xlu0
    %v207 = vpack.c.bf16 %v159, %v159
    %v208 = vpack.c.bf16 %v160, %v160
    %v209 = vpack.c.bf16 %v161, %v161
    %v210 = vpack.c.bf16 %v162, %v162
    %v211 = vpack.c.bf16 %v163, %v163
    %v212 = vpack.c.bf16 %v164, %v164
    %v213 = vpack.c.bf16 %v165, %v165
    %v214 = vpack.c.bf16 %v166, %v166
    %v215 = vpack.c.bf16 %v191, %v191
    %v216 = vpack.c.bf16 %v192, %v192
    %v217 = vpack.c.bf16 %v193, %v193
    %v218 = vpack.c.bf16 %v194, %v194
    %v219 = vpack.c.bf16 %v195, %v195
    %v220 = vpack.c.bf16 %v196, %v196
    %v221 = vpack.c.bf16 %v197, %v197
    %v222 = vpack.c.bf16 %v198, %v198
    %v223 = vpack.c.bf16 %v131, %v131
    %v224 = vpack.c.bf16 %v133, %v133
    %v225 = vlaneseq
    %v226 = vand.u32 %v225, 127
    loop: start=0, step=1, limit=8
    $region54: #{tpu_custom_call.1} parent=1 // loop_pre_header
      _
    $region55: #{tpu_custom_call.1} parent=1 // loop_header
      %s228 = sphi 0, %s232
      %p229 = scmp.ge.s32.totalorder %s228, 8
      %v233 = vphi 0.0, %v392
      %v234 = vphi 0.0, %v393
    $region56: #{tpu_custom_call.1} parent=1 // loop_header_branch
      %231 = sbr.rel (%p229) target = $region60
    $region57: #{tpu_custom_call.1} parent=1 // loop_body
      %s235 = smul.u32 %s228, 8
      %v236 = vstv %s235
      %vm237 = vcmp.ge.s32.totalorder %v226, %v236
      %s238 = sadd.s32 %s235, 8
      %v239 = vstv %s238
      %vm240 = vcmp.lt.s32.totalorder %v226, %v239
      %vm241 = vmand %vm237, %vm240
      %v242 = vsel %vm241, %v117, 0.0
      %v243 = vsel %vm241, %v119, 0.0
      %v244 = vpack.c.bf16 %v242, %v242
      %v245 = vpack.c.bf16 %v243, %v243
      %v254 = vunpack.c.l.b16 %v207
      %v255 = vunpack.c.l.b16 %v208
      %v256 = vunpack.c.l.b16 %v209
      %v257 = vunpack.c.l.b16 %v210
      %v258 = vunpack.c.l.b16 %v211
      %v259 = vunpack.c.l.b16 %v212
      %v260 = vunpack.c.l.b16 %v213
      %v261 = vunpack.c.l.b16 %v214
      %v262 = vpack.c.b16 %v255, %v254
      %v263 = vpack.c.b16 %v257, %v256
      %v264 = vpack.c.b16 %v259, %v258
      %v265 = vpack.c.b16 %v261, %v260
      %v271 = vsel %vm103, %v244, 0
      %273 = vmatpush.bf16.msra.mxu0 0
      %274 = vmatpush.bf16.msra.mxu0 0
      %275 = vmatpush.bf16.msra.mxu0 0
      %276 = vmatpush.bf16.msra.mxu0 0
      %277 = vmatpush.bf16.msra.mxu0 %v265
      %278 = vmatpush.bf16.msra.mxu0 %v264
      %279 = vmatpush.bf16.msra.mxu0 %v263
      %280 = vmatpush.bf16.msra.mxu0 %v262
      %281 = vmatmul.bf16.gmra.mxu0 %v271
      %v282 = vpop.f32.mrf.mxu0
      %v283 = vadd.f32 0.0, %v282
      %v284 = vpop.f32.mrf.mxu0
      %285 = vdwg.mxu0
      %v294 = vunpack.c.l.b16 %v215
      %v295 = vunpack.c.l.b16 %v216
      %v296 = vunpack.c.l.b16 %v217
      %v297 = vunpack.c.l.b16 %v218
      %v298 = vunpack.c.l.b16 %v219
      %v299 = vunpack.c.l.b16 %v220
      %v300 = vunpack.c.l.b16 %v221
      %v301 = vunpack.c.l.b16 %v222
      %v302 = vpack.c.b16 %v295, %v294
      %v303 = vpack.c.b16 %v297, %v296
      %v304 = vpack.c.b16 %v299, %v298
      %v305 = vpack.c.b16 %v301, %v300
      %v311 = vsel %vm103, %v245, 0
      %313 = vmatpush.bf16.msra.mxu0 0
      %314 = vmatpush.bf16.msra.mxu0 0
      %315 = vmatpush.bf16.msra.mxu0 0
      %316 = vmatpush.bf16.msra.mxu0 0
      %317 = vmatpush.bf16.msra.mxu0 %v305
      %318 = vmatpush.bf16.msra.mxu0 %v304
      %319 = vmatpush.bf16.msra.mxu0 %v303
      %320 = vmatpush.bf16.msra.mxu0 %v302
      %321 = vmatmul.bf16.gmra.mxu0 %v311
      %v322 = vpop.f32.mrf.mxu0
      %v323 = vadd.f32 0.0, %v322
      %v324 = vpop.f32.mrf.mxu0
      %325 = vdwg.mxu0
      %vm326 = vcmask 64512
      %v327 = vsel %vm326, %v283, -inf
      %328 = vmax.xlane.f32.xlu0 %v327
      %v329 = vpop.xlane.xlu0 %328
      %v330 = vsel %vm326, %v323, -inf
      %331 = vmax.xlane.f32.xlu0 %v330
      %v332 = vpop.xlane.xlu0 %331
      %v333 = vsub.f32 %v283, %v329
      %v334 = vsub.f32 %v323, %v332
      %v335 = vmul.f32 %v333, 1.442695
      %v336 = vpow.pop %v335
      %v337 = vmul.f32 %v334, 1.442695
      %v338 = vpow.pop %v337
      %v339 = vsel %vm326, %v336, 0.0
      %340 = vadd.xlane.f32.xlu0 %v339
      %v341 = vpop.xlane.xlu0 %340
      %v342 = vsel %vm326, %v338, 0.0
      %343 = vadd.xlane.f32.xlu0 %v342
      %v344 = vpop.xlane.xlu0 %343
      %v345 = vrcp.pop %v341
      %v346 = vrcp.pop %v344
      %v347 = vpack.c.bf16 %v336, %v336
      %v348 = vpack.c.bf16 %v338, %v338
      %v350 = vsel %vm326, %v347, 0
      %vm352 = vcmask 1043456
      %v354 = vsel %vm352, %v223, 0
      %356 = vmatpush.bf16.msra.mxu0 0
      %357 = vmatpush.bf16.msra.mxu0 0
      %358 = vmatpush.bf16.msra.mxu0 0
      %359 = vmatpush.bf16.msra.mxu0 0
      %360 = vmatpush.bf16.msra.mxu0 0
      %361 = vmatpush.bf16.msra.mxu0 0
      %362 = vmatpush.bf16.msra.mxu0 0
      %363 = vmatpush.bf16.msra.mxu0 %v354
      %364 = vmatmul.bf16.gmra.mxu0 %v350
      %v365 = vpop.f32.mrf.mxu0
      %v366 = vadd.f32 0.0, %v365
      %v367 = vpop.f32.mrf.mxu0
      %368 = vdwg.mxu0
      %v370 = vsel %vm326, %v348, 0
      %v373 = vsel %vm352, %v224, 0
      %375 = vmatpush.bf16.msra.mxu0 0
      %376 = vmatpush.bf16.msra.mxu0 0
      %377 = vmatpush.bf16.msra.mxu0 0
      %378 = vmatpush.bf16.msra.mxu0 0
      %379 = vmatpush.bf16.msra.mxu0 0
      %380 = vmatpush.bf16.msra.mxu0 0
      %381 = vmatpush.bf16.msra.mxu0 0
      %382 = vmatpush.bf16.msra.mxu0 %v373
      %383 = vmatmul.bf16.gmra.mxu0 %v370
      %v384 = vpop.f32.mrf.mxu0
      %v385 = vadd.f32 0.0, %v384
      %v386 = vpop.f32.mrf.mxu0
      %387 = vdwg.mxu0
      %v388 = vmul.f32 %v366, %v345
      %v389 = vmul.f32 %v385, %v346
      %v390 = vsel %vm241, %v388, 0.0
      %v391 = vsel %vm241, %v389, 0.0
      %v392 = vadd.f32 %v233, %v390
      %v393 = vadd.f32 %v234, %v391
    $region58: #{tpu_custom_call.1} parent=1 // loop_footer
      %s232 = sadd.s32 1, %s228
    $region59: #{tpu_custom_call.1} parent=1 // loop_footer_branch
      %227 = sbr.rel target = $region55
    $region60: #{tpu_custom_call.1} parent=1 // loop_exit
      _
    %v394 = vpack.c.bf16 %v234, %v233
    %v395 = vld [vmem:[%s3] sm:$0xf]
    %v396 = vld [vmem:[%s3 + $0x4] sm:$0xf]
    %v397 = vld [vmem:[%s3 + $0x8] sm:$0xf]
    %v398 = vld [vmem:[%s3 + $0xc] sm:$0xf]
    %v399 = vld [vmem:[%s3 + $0x10] sm:$0xf]
    %v400 = vld [vmem:[%s3 + $0x14] sm:$0xf]
    %v401 = vld [vmem:[%s3 + $0x18] sm:$0xf]
    %v402 = vld [vmem:[%s3 + $0x1c] sm:$0xf]
    %v403 = vld [vmem:[%s4] sm:$0x1]
    %v405 = vperm.slane %v403, 0
    %v415 = vunpack.c.l.b16 %v395
    %v416 = vunpack.c.l.b16 %v396
    %v417 = vunpack.c.l.b16 %v397
    %v418 = vunpack.c.l.b16 %v398
    %v419 = vunpack.c.l.b16 %v399
    %v420 = vunpack.c.l.b16 %v400
    %v421 = vunpack.c.l.b16 %v401
    %v422 = vunpack.c.l.b16 %v402
    %v423 = vpack.c.b16 %v416, %v415
    %v424 = vpack.c.b16 %v418, %v417
    %v425 = vpack.c.b16 %v420, %v419
    %v426 = vpack.c.b16 %v422, %v421
    %v432 = vsel %vm103, %v394, 0
    %434 = vmatpush.bf16.msra.mxu0 0
    %435 = vmatpush.bf16.msra.mxu0 0
    %436 = vmatpush.bf16.msra.mxu0 0
    %437 = vmatpush.bf16.msra.mxu0 0
    %438 = vmatpush.bf16.msra.mxu0 %v426
    %439 = vmatpush.bf16.msra.mxu0 %v425
    %440 = vmatpush.bf16.msra.mxu0 %v424
    %441 = vmatpush.bf16.msra.mxu0 %v423
    %442 = vmatmul.bf16.gmra.mxu0 %v432
    %v443 = vpop.f32.mrf.mxu0
    %v444 = vadd.f32 %v405, %v443
    %v445 = vpop.f32.mrf.mxu0
    %v446 = vadd.f32 %v405, %v445
    %447 = vdwg.mxu0
    %v448 = vadd.f32 %v46, %v444
    %v449 = vadd.f32 %v47, %v446
    %v450 = vld [vmem:[%s5] sm:$0x1]
    %v451 = vld [vmem:[%s6] sm:$0x1]
    %v452 = vsel %vm103, %v448, 0.0
    %453 = vadd.xlane.f32.xlu0 %v452
    %v454 = vpop.xlane.xlu0 %453
    %v455 = vsel %vm103, %v449, 0.0
    %456 = vadd.xlane.f32.xlu0 %v455
    %v457 = vpop.xlane.xlu0 %456
    %v458 = vrcp.pop 64.0
    %v459 = vmul.f32 64.0, %v458
    %v460 = vsub.f32 1.0, %v459
    %v461 = vmul.f32 %v458, %v460
    %v462 = vadd.f32 %v458, %v461
    %vm463 = vweird.f32 %v458
    %v464 = vsel %vm463, %v458, %v462
    %v465 = vmul.f32 %v454, %v464
    %v466 = vmul.f32 %v457, %v464
    %v467 = vsub.f32 %v448, %v465
    %v468 = vsub.f32 %v449, %v466
    %v469 = vmul.f32 %v467, %v467
    %v470 = vmul.f32 %v468, %v468
    %v471 = vsel %vm103, %v469, 0.0
    %472 = vadd.xlane.f32.xlu0 %v471
    %v473 = vpop.xlane.xlu0 %472
    %v474 = vsel %vm103, %v470, 0.0
    %475 = vadd.xlane.f32.xlu0 %v474
    %v476 = vpop.xlane.xlu0 %475
    %v477 = vmul.f32 %v473, %v464
    %v478 = vmul.f32 %v476, %v464
    %v479 = vadd.f32 %v477, 1e-05
    %v480 = vadd.f32 %v478, 1e-05
    %v481 = vrsqrt.pop %v479
    %v482 = vmul.f32 %v481, %v479
    %v483 = vmul.f32 %v482, %v481
    %v484 = vmul.f32 0.5, %v483
    %v485 = vsub.f32 1.5, %v484
    %v486 = vmul.f32 %v481, %v485
    %vm487 = vweird.f32 %v479
    %vm488 = vweird.f32 %v481
    %vm489 = vmor %vm487, %vm488
    %v490 = vsel %vm489, %v481, %v486
    %v491 = vrsqrt.pop %v480
    %v492 = vmul.f32 %v491, %v480
    %v493 = vmul.f32 %v492, %v491
    %v494 = vmul.f32 0.5, %v493
    %v495 = vsub.f32 1.5, %v494
    %v496 = vmul.f32 %v491, %v495
    %vm497 = vweird.f32 %v480
    %vm498 = vweird.f32 %v491
    %vm499 = vmor %vm497, %vm498
    %v500 = vsel %vm499, %v491, %v496
    %v501 = vmul.f32 %v467, %v490
    %v502 = vmul.f32 %v468, %v500
    %v504 = vperm.slane %v450, 0
    %v506 = vmul.f32 %v501, %v504
    %v507 = vmul.f32 %v502, %v504
    %v509 = vperm.slane %v451, 0
    %v511 = vadd.f32 %v506, %v509
    %v512 = vadd.f32 %v507, %v509
    %v513 = vpack.c.bf16 %v512, %v511
    %v514 = vld [vmem:[%s7] sm:$0xff]
    %v515 = vld [vmem:[%s7 + $0x8] sm:$0xff]
    %v516 = vld [vmem:[%s7 + $0x10] sm:$0xff]
    %v517 = vld [vmem:[%s7 + $0x18] sm:$0xff]
    %v518 = vld [vmem:[%s7 + $0x20] sm:$0xff]
    %v519 = vld [vmem:[%s7 + $0x28] sm:$0xff]
    %v520 = vld [vmem:[%s7 + $0x30] sm:$0xff]
    %v521 = vld [vmem:[%s7 + $0x38] sm:$0xff]
    %v522 = vld [vmem:[%s8] sm:$0x3]
    %v524 = vperm.slane %v522, 0
    %v525 = vperm.slane %v522, 1
    %v536 = vunpack.c.l.b16 %v514
    %v537 = vunpack.c.h.b16 %v514
    %v538 = vunpack.c.l.b16 %v515
    %v539 = vunpack.c.h.b16 %v515
    %v540 = vunpack.c.l.b16 %v516
    %v541 = vunpack.c.h.b16 %v516
    %v542 = vunpack.c.l.b16 %v517
    %v543 = vunpack.c.h.b16 %v517
    %v544 = vunpack.c.l.b16 %v518
    %v545 = vunpack.c.h.b16 %v518
    %v546 = vunpack.c.l.b16 %v519
    %v547 = vunpack.c.h.b16 %v519
    %v548 = vunpack.c.l.b16 %v520
    %v549 = vunpack.c.h.b16 %v520
    %v550 = vunpack.c.l.b16 %v521
    %v551 = vunpack.c.h.b16 %v521
    %v552 = vpack.c.b16 %v538, %v536
    %v553 = vpack.c.b16 %v539, %v537
    %v554 = vpack.c.b16 %v542, %v540
    %v555 = vpack.c.b16 %v543, %v541
    %v556 = vpack.c.b16 %v546, %v544
    %v557 = vpack.c.b16 %v547, %v545
    %v558 = vpack.c.b16 %v550, %v548
    %v559 = vpack.c.b16 %v551, %v549
    %v569 = vsel %vm103, %v513, 0
    %571 = vmatpush.bf16.msra.mxu0 0
    %572 = vmatpush.bf16.msra.mxu0 0
    %573 = vmatpush.bf16.msra.mxu0 0
    %574 = vmatpush.bf16.msra.mxu0 0
    %575 = vmatpush.bf16.msra.mxu0 %v558
    %576 = vmatpush.bf16.msra.mxu0 %v556
    %577 = vmatpush.bf16.msra.mxu0 %v554
    %578 = vmatpush.bf16.msra.mxu0 %v552
    %579 = vmatmul.bf16.gmra.mxu0 %v569
    %v580 = vpop.f32.mrf.mxu0
    %v581 = vadd.f32 %v524, %v580
    %v582 = vpop.f32.mrf.mxu0
    %v583 = vadd.f32 %v524, %v582
    %584 = vdwg.mxu0
    %585 = vmatpush.bf16.msra.mxu0 0
    %586 = vmatpush.bf16.msra.mxu0 0
    %587 = vmatpush.bf16.msra.mxu0 0
    %588 = vmatpush.bf16.msra.mxu0 0
    %589 = vmatpush.bf16.msra.mxu0 %v559
    %590 = vmatpush.bf16.msra.mxu0 %v557
    %591 = vmatpush.bf16.msra.mxu0 %v555
    %592 = vmatpush.bf16.msra.mxu0 %v553
    %593 = vmatmul.bf16.gmra.mxu0 %v569
    %v594 = vpop.f32.mrf.mxu0
    %v595 = vadd.f32 %v525, %v594
    %v596 = vpop.f32.mrf.mxu0
    %v597 = vadd.f32 %v525, %v596
    %598 = vdwg.mxu0
    %v599 = vmax.f32 %v581, 0.0
    %v600 = vmax.f32 %v595, 0.0
    %v601 = vmax.f32 %v583, 0.0
    %v602 = vmax.f32 %v597, 0.0
    %v603 = vpack.c.bf16 %v601, %v599
    %v604 = vpack.c.bf16 %v602, %v600
    %v605 = vld [vmem:[%s9] sm:$0xf]
    %v606 = vld [vmem:[%s9 + $0x4] sm:$0xf]
    %v607 = vld [vmem:[%s9 + $0x8] sm:$0xf]
    %v608 = vld [vmem:[%s9 + $0xc] sm:$0xf]
    %v609 = vld [vmem:[%s9 + $0x10] sm:$0xf]
    %v610 = vld [vmem:[%s9 + $0x14] sm:$0xf]
    %v611 = vld [vmem:[%s9 + $0x18] sm:$0xf]
    %v612 = vld [vmem:[%s9 + $0x1c] sm:$0xf]
    %v613 = vld [vmem:[%s9 + $0x20] sm:$0xf]
    %v614 = vld [vmem:[%s9 + $0x24] sm:$0xf]
    %v615 = vld [vmem:[%s9 + $0x28] sm:$0xf]
    %v616 = vld [vmem:[%s9 + $0x2c] sm:$0xf]
    %v617 = vld [vmem:[%s9 + $0x30] sm:$0xf]
    %v618 = vld [vmem:[%s9 + $0x34] sm:$0xf]
    %v619 = vld [vmem:[%s9 + $0x38] sm:$0xf]
    %v620 = vld [vmem:[%s9 + $0x3c] sm:$0xf]
    %v621 = vld [vmem:[%s9 + $0x40] sm:$0xf]
    %v622 = vld [vmem:[%s9 + $0x44] sm:$0xf]
    %v623 = vld [vmem:[%s9 + $0x48] sm:$0xf]
    %v624 = vld [vmem:[%s9 + $0x4c] sm:$0xf]
    %v625 = vld [vmem:[%s9 + $0x50] sm:$0xf]
    %v626 = vld [vmem:[%s9 + $0x54] sm:$0xf]
    %v627 = vld [vmem:[%s9 + $0x58] sm:$0xf]
    %v628 = vld [vmem:[%s9 + $0x5c] sm:$0xf]
    %v629 = vld [vmem:[%s9 + $0x60] sm:$0xf]
    %v630 = vld [vmem:[%s9 + $0x64] sm:$0xf]
    %v631 = vld [vmem:[%s9 + $0x68] sm:$0xf]
    %v632 = vld [vmem:[%s9 + $0x6c] sm:$0xf]
    %v633 = vld [vmem:[%s9 + $0x70] sm:$0xf]
    %v634 = vld [vmem:[%s9 + $0x74] sm:$0xf]
    %v635 = vld [vmem:[%s9 + $0x78] sm:$0xf]
    %v636 = vld [vmem:[%s9 + $0x7c] sm:$0xf]
    %v637 = vld [vmem:[%s10] sm:$0x1]
    %v639 = vperm.slane %v637, 0
    %v673 = vunpack.c.l.b16 %v605
    %v674 = vunpack.c.l.b16 %v606
    %v675 = vunpack.c.l.b16 %v607
    %v676 = vunpack.c.l.b16 %v608
    %v677 = vunpack.c.l.b16 %v609
    %v678 = vunpack.c.l.b16 %v610
    %v679 = vunpack.c.l.b16 %v611
    %v680 = vunpack.c.l.b16 %v612
    %v681 = vunpack.c.l.b16 %v613
    %v682 = vunpack.c.l.b16 %v614
    %v683 = vunpack.c.l.b16 %v615
    %v684 = vunpack.c.l.b16 %v616
    %v685 = vunpack.c.l.b16 %v617
    %v686 = vunpack.c.l.b16 %v618
    %v687 = vunpack.c.l.b16 %v619
    %v688 = vunpack.c.l.b16 %v620
    %v689 = vunpack.c.l.b16 %v621
    %v690 = vunpack.c.l.b16 %v622
    %v691 = vunpack.c.l.b16 %v623
    %v692 = vunpack.c.l.b16 %v624
    %v693 = vunpack.c.l.b16 %v625
    %v694 = vunpack.c.l.b16 %v626
    %v695 = vunpack.c.l.b16 %v627
    %v696 = vunpack.c.l.b16 %v628
    %v697 = vunpack.c.l.b16 %v629
    %v698 = vunpack.c.l.b16 %v630
    %v699 = vunpack.c.l.b16 %v631
    %v700 = vunpack.c.l.b16 %v632
    %v701 = vunpack.c.l.b16 %v633
    %v702 = vunpack.c.l.b16 %v634
    %v703 = vunpack.c.l.b16 %v635
    %v704 = vunpack.c.l.b16 %v636
    %v705 = vpack.c.b16 %v674, %v673
    %v706 = vpack.c.b16 %v676, %v675
    %v707 = vpack.c.b16 %v678, %v677
    %v708 = vpack.c.b16 %v680, %v679
    %v709 = vpack.c.b16 %v682, %v681
    %v710 = vpack.c.b16 %v684, %v683
    %v711 = vpack.c.b16 %v686, %v685
    %v712 = vpack.c.b16 %v688, %v687
    %v713 = vpack.c.b16 %v690, %v689
    %v714 = vpack.c.b16 %v692, %v691
    %v715 = vpack.c.b16 %v694, %v693
    %v716 = vpack.c.b16 %v696, %v695
    %v717 = vpack.c.b16 %v698, %v697
    %v718 = vpack.c.b16 %v700, %v699
    %v719 = vpack.c.b16 %v702, %v701
    %v720 = vpack.c.b16 %v704, %v703
    %737 = vmatpush.bf16.msra.mxu0 %v712
    %738 = vmatpush.bf16.msra.mxu0 %v711
    %739 = vmatpush.bf16.msra.mxu0 %v710
    %740 = vmatpush.bf16.msra.mxu0 %v709
    %741 = vmatpush.bf16.msra.mxu0 %v708
    %742 = vmatpush.bf16.msra.mxu0 %v707
    %743 = vmatpush.bf16.msra.mxu0 %v706
    %744 = vmatpush.bf16.msra.mxu0 %v705
    %745 = vmatmul.bf16.gmra.mxu0 %v603
    %v746 = vpop.f32.mrf.mxu0
    %v747 = vadd.f32 %v639, %v746
    %v748 = vpop.f32.mrf.mxu0
    %v749 = vadd.f32 %v639, %v748
    %750 = vdwg.mxu0
    %751 = vmatpush.bf16.msra.mxu0 %v720
    %752 = vmatpush.bf16.msra.mxu0 %v719
    %753 = vmatpush.bf16.msra.mxu0 %v718
    %754 = vmatpush.bf16.msra.mxu0 %v717
    %755 = vmatpush.bf16.msra.mxu0 %v716
    %756 = vmatpush.bf16.msra.mxu0 %v715
    %757 = vmatpush.bf16.msra.mxu0 %v714
    %758 = vmatpush.bf16.msra.mxu0 %v713
    %759 = vmatmul.bf16.gmra.mxu0 %v604
    %v760 = vpop.f32.mrf.mxu0
    %v761 = vadd.f32 %v747, %v760
    %v762 = vpop.f32.mrf.mxu0
    %v763 = vadd.f32 %v749, %v762
    %764 = vdwg.mxu0
    %v765 = vadd.f32 %v511, %v761
    %v766 = vadd.f32 %v512, %v763
    %v767 = vld [vmem:[%s11] sm:$0x1]
    %v768 = vld [vmem:[%s12] sm:$0x1]
    %v769 = vsel %vm103, %v765, 0.0
    %770 = vadd.xlane.f32.xlu0 %v769
    %v771 = vpop.xlane.xlu0 %770
    %v772 = vsel %vm103, %v766, 0.0
    %773 = vadd.xlane.f32.xlu0 %v772
    %v774 = vpop.xlane.xlu0 %773
    %v775 = vmul.f32 %v771, %v464
    %v776 = vmul.f32 %v774, %v464
    %v777 = vsub.f32 %v765, %v775
    %v778 = vsub.f32 %v766, %v776
    %v779 = vmul.f32 %v777, %v777
    %v780 = vmul.f32 %v778, %v778
    %v781 = vsel %vm103, %v779, 0.0
    %782 = vadd.xlane.f32.xlu0 %v781
    %v783 = vpop.xlane.xlu0 %782
    %v784 = vsel %vm103, %v780, 0.0
    %785 = vadd.xlane.f32.xlu0 %v784
    %v786 = vpop.xlane.xlu0 %785
    %v787 = vmul.f32 %v783, %v464
    %v788 = vmul.f32 %v786, %v464
    %v789 = vadd.f32 %v787, 1e-05
    %v790 = vadd.f32 %v788, 1e-05
    %v791 = vrsqrt.pop %v789
    %v792 = vmul.f32 %v791, %v789
    %v793 = vmul.f32 %v792, %v791
    %v794 = vmul.f32 0.5, %v793
    %v795 = vsub.f32 1.5, %v794
    %v796 = vmul.f32 %v791, %v795
    %vm797 = vweird.f32 %v789
    %vm798 = vweird.f32 %v791
    %vm799 = vmor %vm797, %vm798
    %v800 = vsel %vm799, %v791, %v796
    %v801 = vrsqrt.pop %v790
    %v802 = vmul.f32 %v801, %v790
    %v803 = vmul.f32 %v802, %v801
    %v804 = vmul.f32 0.5, %v803
    %v805 = vsub.f32 1.5, %v804
    %v806 = vmul.f32 %v801, %v805
    %vm807 = vweird.f32 %v790
    %vm808 = vweird.f32 %v801
    %vm809 = vmor %vm807, %vm808
    %v810 = vsel %vm809, %v801, %v806
    %v811 = vmul.f32 %v777, %v800
    %v812 = vmul.f32 %v778, %v810
    %v814 = vperm.slane %v767, 0
    %v816 = vmul.f32 %v811, %v814
    %v817 = vmul.f32 %v812, %v814
    %v819 = vperm.slane %v768, 0
    %v821 = vadd.f32 %v816, %v819
    %v822 = vadd.f32 %v817, %v819
    %823 = vst.msk [vmem:[#allocation2] sm:$0xff] %vm103, %v821
    %824 = vst.msk [vmem:[#allocation2 + $0x8] sm:$0xff] %vm103, %v822
    // Predicated region
    $region61: #{tpu_custom_call.1} parent=1 // pred_check
      _
    $region62: #{tpu_custom_call.1} parent=1 // pred_check_branch
      %826 = sbr.rel (0) target = $region64
    $region63: #{tpu_custom_call.1} parent=1 // pred_region
      %828 = vsyncadd [#allocation3], 0
      %s829 = sshll.u32 [#allocation2], 4
      %s830 = int_to_ptr.vmem [resolvable:$true] %s829
      %s831 = sshll.u32 %s13, 4
      %s832 = int_to_ptr.hbm [resolvable:$true] %s831
      %837 = dma.vmem_to_hbm [thread:$0]  %s830, 256, %s832, [#allocation3], 128, 128, 8
    $region64: #{tpu_custom_call.1} parent=1 // pred_fallthru
      _
    // Predicated region
    $region65: #{tpu_custom_call.1} parent=1 // pred_check
      _
    $region66: #{tpu_custom_call.1} parent=1 // pred_check_branch
      %839 = sbr.rel (0) target = $region68
    $region67: #{tpu_custom_call.1} parent=1 // pred_region
      %841 = dma.done [#allocation3], 256
    $region68: #{tpu_custom_call.1} parent=1 // pred_fallthru
      _
    %842 = vsyncpa [#allocation3], 1

// kernel: tpu_custom_call.1
$region0: #{tpu_custom_call.1}
  #allocation0 [shape = 'u32[]', space=smem, size = 0x4, offset = 0x4, fixed_abs, tag = 'smem constant byte address 0x4 - core index']
  #allocation1 [shape = 'u32[72,128]{1,0:T(1,128)}', space=vmem, size = 0x9000, scoped, tag = 'internal scratch']
  %s0 = inlined_call_operand.vmem [shape: f32[2,8,64], index: 0, kind: input, shape index: {}]
  %s1 = inlined_call_operand.vmem [shape: bf16[64,192], index: 1, kind: input, shape index: {}]
  %s2 = inlined_call_operand.vmem [shape: f32[1,192], index: 2, kind: input, shape index: {}]
  %s3 = inlined_call_operand.vmem [shape: bf16[64,64], index: 3, kind: input, shape index: {}]
  %s4 = inlined_call_operand.vmem [shape: f32[1,64], index: 4, kind: input, shape index: {}]
  %s5 = inlined_call_operand.vmem [shape: f32[1,64], index: 5, kind: input, shape index: {}]
  %s6 = inlined_call_operand.vmem [shape: f32[1,64], index: 6, kind: input, shape index: {}]
  %s7 = inlined_call_operand.vmem [shape: bf16[64,256], index: 7, kind: input, shape index: {}]
  %s8 = inlined_call_operand.vmem [shape: f32[1,256], index: 8, kind: input, shape index: {}]
  %s9 = inlined_call_operand.vmem [shape: bf16[256,64], index: 9, kind: input, shape index: {}]
  %s10 = inlined_call_operand.vmem [shape: f32[1,64], index: 10, kind: input, shape index: {}]
  %s11 = inlined_call_operand.vmem [shape: f32[1,64], index: 11, kind: input, shape index: {}]
  %s12 = inlined_call_operand.vmem [shape: f32[1,64], index: 12, kind: input, shape index: {}]
  %s13 = inlined_call_operand.hbm [shape: f32[2,8,64], index: 13, kind: output, shape index: {}]
  %s14 = sld [smem:[#allocation0]]
  $region69: #{tpu_custom_call.1} parent=0
    _
  %s16 = ssub.s32 1, %s14
  %s17 = scalar_select 0, %s16, %s14
  $region1: #{tpu_custom_call.1} parent=0
    #allocation2 [shape = 'u8[8192]{0}', space=vmem, size = 0x2000, scoped, tag = 'output window, operand 0, single buffered']
    #allocation3 [shape = 's32[1]{0}', space=sflag, size = 0x4, scoped, tag = 'scoped memory for tpu_custom_call.1']
    %18 = vsyncpa [#allocation3], 0
    // Predicated region
    $region2: #{tpu_custom_call.1} parent=1 // pred_check
      _
    $region3: #{tpu_custom_call.1} parent=1 // pred_check_branch
      %20 = sbr.rel (0) target = $region5
    $region4: #{tpu_custom_call.1} parent=1 // pred_region
      _
    $region5: #{tpu_custom_call.1} parent=1 // pred_fallthru
      _
    // Predicated region
    $region6: #{tpu_custom_call.1} parent=1 // pred_check
      _
    $region7: #{tpu_custom_call.1} parent=1 // pred_check_branch
      %22 = sbr.rel (0) target = $region9
    $region8: #{tpu_custom_call.1} parent=1 // pred_region
      _
    $region9: #{tpu_custom_call.1} parent=1 // pred_fallthru
      _
    // Predicated region
    $region10: #{tpu_custom_call.1} parent=1 // pred_check
      _
    $region11: #{tpu_custom_call.1} parent=1 // pred_check_branch
      %24 = sbr.rel (0) target = $region13
    $region12: #{tpu_custom_call.1} parent=1 // pred_region
      _
    $region13: #{tpu_custom_call.1} parent=1 // pred_fallthru
      _
    // Predicated region
    $region14: #{tpu_custom_call.1} parent=1 // pred_check
      _
    $region15: #{tpu_custom_call.1} parent=1 // pred_check_branch
      %26 = sbr.rel (0) target = $region17
    $region16: #{tpu_custom_call.1} parent=1 // pred_region
      _
    $region17: #{tpu_custom_call.1} parent=1 // pred_fallthru
      _
    // Predicated region
    $region18: #{tpu_custom_call.1} parent=1 // pred_check
      _
    $region19: #{tpu_custom_call.1} parent=1 // pred_check_branch
      %28 = sbr.rel (0) target = $region21
    $region20: #{tpu_custom_call.1} parent=1 // pred_region
      _
    $region21: #{tpu_custom_call.1} parent=1 // pred_fallthru
      _
    // Predicated region
    $region22: #{tpu_custom_call.1} parent=1 // pred_check
      _
    $region23: #{tpu_custom_call.1} parent=1 // pred_check_branch
      %30 = sbr.rel (0) target = $region25
    $region24: #{tpu_custom_call.1} parent=1 // pred_region
      _
    $region25: #{tpu_custom_call.1} parent=1 // pred_fallthru
      _
    // Predicated region
    $region26: #{tpu_custom_call.1} parent=1 // pred_check
      _
    $region27: #{tpu_custom_call.1} parent=1 // pred_check_branch
      %32 = sbr.rel (0) target = $region29
    $region28: #{tpu_custom_call.1} parent=1 // pred_region
      _
    $region29: #{tpu_custom_call.1} parent=1 // pred_fallthru
      _
    // Predicated region
    $region30: #{tpu_custom_call.1} parent=1 // pred_check
      _
    $region31: #{tpu_custom_call.1} parent=1 // pred_check_branch
      %34 = sbr.rel (0) target = $region33
    $region32: #{tpu_custom_call.1} parent=1 // pred_region
      _
    $region33: #{tpu_custom_call.1} parent=1 // pred_fallthru
      _
    // Predicated region
    $region34: #{tpu_custom_call.1} parent=1 // pred_check
      _
    $region35: #{tpu_custom_call.1} parent=1 // pred_check_branch
      %36 = sbr.rel (0) target = $region37
    $region36: #{tpu_custom_call.1} parent=1 // pred_region
      _
    $region37: #{tpu_custom_call.1} parent=1 // pred_fallthru
      _
    // Predicated region
    $region38: #{tpu_custom_call.1} parent=1 // pred_check
      _
    $region39: #{tpu_custom_call.1} parent=1 // pred_check_branch
      %38 = sbr.rel (0) target = $region41
    $region40: #{tpu_custom_call.1} parent=1 // pred_region
      _
    $region41: #{tpu_custom_call.1} parent=1 // pred_fallthru
      _
    // Predicated region
    $region42: #{tpu_custom_call.1} parent=1 // pred_check
      _
    $region43: #{tpu_custom_call.1} parent=1 // pred_check_branch
      %40 = sbr.rel (0) target = $region45
    $region44: #{tpu_custom_call.1} parent=1 // pred_region
      _
    $region45: #{tpu_custom_call.1} parent=1 // pred_fallthru
      _
    // Predicated region
    $region46: #{tpu_custom_call.1} parent=1 // pred_check
      _
    $region47: #{tpu_custom_call.1} parent=1 // pred_check_branch
      %42 = sbr.rel (0) target = $region49
    $region48: #{tpu_custom_call.1} parent=1 // pred_region
      _
    $region49: #{tpu_custom_call.1} parent=1 // pred_fallthru
      _
    // Predicated region
    $region50: #{tpu_custom_call.1} parent=1 // pred_check
      _
    $region51: #{tpu_custom_call.1} parent=1 // pred_check_branch
      %44 = sbr.rel (0) target = $region53
    $region52: #{tpu_custom_call.1} parent=1 // pred_region
      _
    $region53: #{tpu_custom_call.1} parent=1 // pred_fallthru
      _
    %v46 = vld [vmem:[%s0] sm:$0xff]
    %v47 = vld [vmem:[%s0 + $0x8] sm:$0xff]
    %v48 = vpack.c.bf16 %v47, %v46
    %v49 = vld [vmem:[%s1] sm:$0xff]
    %v50 = vld [vmem:[%s1 + $0x8] sm:$0xff]
    %v51 = vld [vmem:[%s1 + $0x10] sm:$0xff]
    %v52 = vld [vmem:[%s1 + $0x18] sm:$0xff]
    %v53 = vld [vmem:[%s1 + $0x20] sm:$0xff]
    %v54 = vld [vmem:[%s1 + $0x28] sm:$0xff]
    %v55 = vld [vmem:[%s1 + $0x30] sm:$0xff]
    %v56 = vld [vmem:[%s1 + $0x38] sm:$0xff]
    %v57 = vld [vmem:[%s2] sm:$0x3]
    %v59 = vperm.slane %v57, 0
    %v60 = vperm.slane %v57, 1
    %v71 = vunpack.c.l.b16 %v49
    %v72 = vunpack.c.h.b16 %v49
    %v73 = vunpack.c.l.b16 %v50
    %v74 = vunpack.c.h.b16 %v50
    %v75 = vunpack.c.l.b16 %v51
    %v76 = vunpack.c.h.b16 %v51
    %v77 = vunpack.c.l.b16 %v52
    %v78 = vunpack.c.h.b16 %v52
    %v79 = vunpack.c.l.b16 %v53
    %v80 = vunpack.c.h.b16 %v53
    %v81 = vunpack.c.l.b16 %v54
    %v82 = vunpack.c.h.b16 %v54
    %v83 = vunpack.c.l.b16 %v55
    %v84 = vunpack.c.h.b16 %v55
    %v85 = vunpack.c.l.b16 %v56
    %v86 = vunpack.c.h.b16 %v56
    %v87 = vpack.c.b16 %v73, %v71
    %v88 = vpack.c.b16 %v74, %v72
    %v89 = vpack.c.b16 %v77, %v75
    %v90 = vpack.c.b16 %v78, %v76
    %v91 = vpack.c.b16 %v81, %v79
    %v92 = vpack.c.b16 %v82, %v80
    %v93 = vpack.c.b16 %v85, %v83
    %v94 = vpack.c.b16 %v86, %v84
    %vm103 = vcmask 523264
    %v105 = vsel %vm103, %v48, 0
    %107 = vmatpush.bf16.msra.mxu0 0
    %108 = vmatpush.bf16.msra.mxu0 0
    %109 = vmatpush.bf16.msra.mxu0 0
    %110 = vmatpush.bf16.msra.mxu0 0
    %111 = vmatpush.bf16.msra.mxu0 %v93
    %112 = vmatpush.bf16.msra.mxu0 %v91
    %113 = vmatpush.bf16.msra.mxu0 %v89
    %114 = vmatpush.bf16.msra.mxu0 %v87
    %115 = vmatmul.bf16.gmra.mxu0 %v105
    %v116 = vpop.f32.mrf.mxu0
    %v117 = vadd.f32 %v59, %v116
    %v118 = vpop.f32.mrf.mxu0
    %v119 = vadd.f32 %v59, %v118
    %120 = vdwg.mxu0
    %121 = vmatpush.bf16.msra.mxu0 0
    %122 = vmatpush.bf16.msra.mxu0 0
    %123 = vmatpush.bf16.msra.mxu0 0
    %124 = vmatpush.bf16.msra.mxu0 0
    %125 = vmatpush.bf16.msra.mxu0 %v94
    %126 = vmatpush.bf16.msra.mxu0 %v92
    %127 = vmatpush.bf16.msra.mxu0 %v90
    %128 = vmatpush.bf16.msra.mxu0 %v88
    %129 = vmatmul.bf16.gmra.mxu0 %v105
    %v130 = vpop.f32.mrf.mxu0
    %v131 = vadd.f32 %v60, %v130
    %v132 = vpop.f32.mrf.mxu0
    %v133 = vadd.f32 %v60, %v132
    %134 = vdwg.mxu0
    %137 = vrot.lane.b32.xlu0 %v117, 64
    %v138 = vpop.permute.xlu0 %137
    %139 = vrot.lane.b32.xlu0 %v119, 64
    %v140 = vpop.permute.xlu0 %139
    %143 = vxpose.xlu0.b32.start [1/16] %v138, 128
    %144 = vxpose.xlu0.b32.cont [2/16] 0.0, 128
    %145 = vxpose.xlu0.b32.cont [3/16] 0.0, 128
    %146 = vxpose.xlu0.b32.cont [4/16] 0.0, 128
    %147 = vxpose.xlu0.b32.cont [5/16] 0.0, 128
    %148 = vxpose.xlu0.b32.cont [6/16] 0.0, 128
    %149 = vxpose.xlu0.b32.cont [7/16] 0.0, 128
    %150 = vxpose.xlu0.b32.cont [8/16] 0.0, 128
    %151 = vxpose.xlu0.b32.cont [9/16] 0.0, 128
    %152 = vxpose.xlu0.b32.cont [10/16] 0.0, 128
    %153 = vxpose.xlu0.b32.cont [11/16] 0.0, 128
    %154 = vxpose.xlu0.b32.cont [12/16] 0.0, 128
    %155 = vxpose.xlu0.b32.cont [13/16] 0.0, 128
    %156 = vxpose.xlu0.b32.cont [14/16] 0.0, 128
    %157 = vxpose.xlu0.b32.cont [15/16] 0.0, 128
    %158 = vxpose.xlu0.b32.end [16/16] 0.0, 128
    %v159 = vpop.trf.xlu0
    %v160 = vpop.trf.xlu0
    %v161 = vpop.trf.xlu0
    %v162 = vpop.trf.xlu0
    %v163 = vpop.trf.xlu0
    %v164 = vpop.trf.xlu0
    %v165 = vpop.trf.xlu0
    %v166 = vpop.trf.xlu0
    %v167 = vpop.trf.xlu0
    %v168 = vpop.trf.xlu0
    %v169 = vpop.trf.xlu0
    %v170 = vpop.trf.xlu0
    %v171 = vpop.trf.xlu0
    %v172 = vpop.trf.xlu0
    %v173 = vpop.trf.xlu0
    %v174 = vpop.trf.xlu0
    %175 = vxpose.xlu0.b32.start [1/16] %v140, 128
    %176 = vxpose.xlu0.b32.cont [2/16] 0.0, 128
    %177 = vxpose.xlu0.b32.cont [3/16] 0.0, 128
    %178 = vxpose.xlu0.b32.cont [4/16] 0.0, 128
    %179 = vxpose.xlu0.b32.cont [5/16] 0.0, 128
    %180 = vxpose.xlu0.b32.cont [6/16] 0.0, 128
    %181 = vxpose.xlu0.b32.cont [7/16] 0.0, 128
    %182 = vxpose.xlu0.b32.cont [8/16] 0.0, 128
    %183 = vxpose.xlu0.b32.cont [9/16] 0.0, 128
    %184 = vxpose.xlu0.b32.cont [10/16] 0.0, 128
    %185 = vxpose.xlu0.b32.cont [11/16] 0.0, 128
    %186 = vxpose.xlu0.b32.cont [12/16] 0.0, 128
    %187 = vxpose.xlu0.b32.cont [13/16] 0.0, 128
    %188 = vxpose.xlu0.b32.cont [14/16] 0.0, 128
    %189 = vxpose.xlu0.b32.cont [15/16] 0.0, 128
    %190 = vxpose.xlu0.b32.end [16/16] 0.0, 128
    %v191 = vpop.trf.xlu0
    %v192 = vpop.trf.xlu0
    %v193 = vpop.trf.xlu0
    %v194 = vpop.trf.xlu0
    %v195 = vpop.trf.xlu0
    %v196 = vpop.trf.xlu0
    %v197 = vpop.trf.xlu0
    %v198 = vpop.trf.xlu0
    %v199 = vpop.trf.xlu0
    %v200 = vpop.trf.xlu0
    %v201 = vpop.trf.xlu0
    %v202 = vpop.trf.xlu0
    %v203 = vpop.trf.xlu0
    %v204 = vpop.trf.xlu0
    %v205 = vpop.trf.xlu0
    %v206 = vpop.trf.xlu0
    %v207 = vpack.c.bf16 %v159, %v159
    %v208 = vpack.c.bf16 %v160, %v160
    %v209 = vpack.c.bf16 %v161, %v161
    %v210 = vpack.c.bf16 %v162, %v162
    %v211 = vpack.c.bf16 %v163, %v163
    %v212 = vpack.c.bf16 %v164, %v164
    %v213 = vpack.c.bf16 %v165, %v165
    %v214 = vpack.c.bf16 %v166, %v166
    %v215 = vpack.c.bf16 %v191, %v191
    %v216 = vpack.c.bf16 %v192, %v192
    %v217 = vpack.c.bf16 %v193, %v193
    %v218 = vpack.c.bf16 %v194, %v194
    %v219 = vpack.c.bf16 %v195, %v195
    %v220 = vpack.c.bf16 %v196, %v196
    %v221 = vpack.c.bf16 %v197, %v197
    %v222 = vpack.c.bf16 %v198, %v198
    %v223 = vpack.c.bf16 %v131, %v131
    %v224 = vpack.c.bf16 %v133, %v133
    %v225 = vlaneseq
    %v226 = vand.u32 %v225, 127
    loop: start=0, step=1, limit=8
    $region54: #{tpu_custom_call.1} parent=1 // loop_pre_header
      _
    $region55: #{tpu_custom_call.1} parent=1 // loop_header
      %s228 = sphi 0, %s232
      %p229 = scmp.ge.s32.totalorder %s228, 8
      %v233 = vphi 0.0, %v392
      %v234 = vphi 0.0, %v393
    $region56: #{tpu_custom_call.1} parent=1 // loop_header_branch
      %231 = sbr.rel (%p229) target = $region60
    $region57: #{tpu_custom_call.1} parent=1 // loop_body
      %s235 = smul.u32 %s228, 8
      %v236 = vstv %s235
      %vm237 = vcmp.ge.s32.totalorder %v226, %v236
      %s238 = sadd.s32 %s235, 8
      %v239 = vstv %s238
      %vm240 = vcmp.lt.s32.totalorder %v226, %v239
      %vm241 = vmand %vm237, %vm240
      %v242 = vsel %vm241, %v117, 0.0
      %v243 = vsel %vm241, %v119, 0.0
      %v244 = vpack.c.bf16 %v242, %v242
      %v245 = vpack.c.bf16 %v243, %v243
      %v254 = vunpack.c.l.b16 %v207
      %v255 = vunpack.c.l.b16 %v208
      %v256 = vunpack.c.l.b16 %v209
      %v257 = vunpack.c.l.b16 %v210
      %v258 = vunpack.c.l.b16 %v211
      %v259 = vunpack.c.l.b16 %v212
      %v260 = vunpack.c.l.b16 %v213
      %v261 = vunpack.c.l.b16 %v214
      %v262 = vpack.c.b16 %v255, %v254
      %v263 = vpack.c.b16 %v257, %v256
      %v264 = vpack.c.b16 %v259, %v258
      %v265 = vpack.c.b16 %v261, %v260
      %v271 = vsel %vm103, %v244, 0
      %273 = vmatpush.bf16.msra.mxu0 0
      %274 = vmatpush.bf16.msra.mxu0 0
      %275 = vmatpush.bf16.msra.mxu0 0
      %276 = vmatpush.bf16.msra.mxu0 0
      %277 = vmatpush.bf16.msra.mxu0 %v265
      %278 = vmatpush.bf16.msra.mxu0 %v264
      %279 = vmatpush.bf16.msra.mxu0 %v263
      %280 = vmatpush.bf16.msra.mxu0 %v262
      %281 = vmatmul.bf16.gmra.mxu0 %v271
      %v282 = vpop.f32.mrf.mxu0
      %v283 = vadd.f32 0.0, %v282
      %v284 = vpop.f32.mrf.mxu0
      %285 = vdwg.mxu0
      %v294 = vunpack.c.l.b16 %v215
      %v295 = vunpack.c.l.b16 %v216
      %v296 = vunpack.c.l.b16 %v217
      %v297 = vunpack.c.l.b16 %v218
      %v298 = vunpack.c.l.b16 %v219
      %v299 = vunpack.c.l.b16 %v220
      %v300 = vunpack.c.l.b16 %v221
      %v301 = vunpack.c.l.b16 %v222
      %v302 = vpack.c.b16 %v295, %v294
      %v303 = vpack.c.b16 %v297, %v296
      %v304 = vpack.c.b16 %v299, %v298
      %v305 = vpack.c.b16 %v301, %v300
      %v311 = vsel %vm103, %v245, 0
      %313 = vmatpush.bf16.msra.mxu0 0
      %314 = vmatpush.bf16.msra.mxu0 0
      %315 = vmatpush.bf16.msra.mxu0 0
      %316 = vmatpush.bf16.msra.mxu0 0
      %317 = vmatpush.bf16.msra.mxu0 %v305
      %318 = vmatpush.bf16.msra.mxu0 %v304
      %319 = vmatpush.bf16.msra.mxu0 %v303
      %320 = vmatpush.bf16.msra.mxu0 %v302
      %321 = vmatmul.bf16.gmra.mxu0 %v311
      %v322 = vpop.f32.mrf.mxu0
      %v323 = vadd.f32 0.0, %v322
      %v324 = vpop.f32.mrf.mxu0
      %325 = vdwg.mxu0
      %vm326 = vcmask 64512
      %v327 = vsel %vm326, %v283, -inf
      %328 = vmax.xlane.f32.xlu0 %v327
      %v329 = vpop.xlane.xlu0 %328
      %v330 = vsel %vm326, %v323, -inf
      %331 = vmax.xlane.f32.xlu0 %v330
      %v332 = vpop.xlane.xlu0 %331
      %v333 = vsub.f32 %v283, %v329
      %v334 = vsub.f32 %v323, %v332
      %v335 = vmul.f32 %v333, 1.442695
      %v336 = vpow.pop %v335
      %v337 = vmul.f32 %v334, 1.442695
      %v338 = vpow.pop %v337
      %v339 = vsel %vm326, %v336, 0.0
      %340 = vadd.xlane.f32.xlu0 %v339
      %v341 = vpop.xlane.xlu0 %340
      %v342 = vsel %vm326, %v338, 0.0
      %343 = vadd.xlane.f32.xlu0 %v342
      %v344 = vpop.xlane.xlu0 %343
      %v345 = vrcp.pop %v341
      %v346 = vrcp.pop %v344
      %v347 = vpack.c.bf16 %v336, %v336
      %v348 = vpack.c.bf16 %v338, %v338
      %v350 = vsel %vm326, %v347, 0
      %vm352 = vcmask 1043456
      %v354 = vsel %vm352, %v223, 0
      %356 = vmatpush.bf16.msra.mxu0 0
      %357 = vmatpush.bf16.msra.mxu0 0
      %358 = vmatpush.bf16.msra.mxu0 0
      %359 = vmatpush.bf16.msra.mxu0 0
      %360 = vmatpush.bf16.msra.mxu0 0
      %361 = vmatpush.bf16.msra.mxu0 0
      %362 = vmatpush.bf16.msra.mxu0 0
      %363 = vmatpush.bf16.msra.mxu0 %v354
      %364 = vmatmul.bf16.gmra.mxu0 %v350
      %v365 = vpop.f32.mrf.mxu0
      %v366 = vadd.f32 0.0, %v365
      %v367 = vpop.f32.mrf.mxu0
      %368 = vdwg.mxu0
      %v370 = vsel %vm326, %v348, 0
      %v373 = vsel %vm352, %v224, 0
      %375 = vmatpush.bf16.msra.mxu0 0
      %376 = vmatpush.bf16.msra.mxu0 0
      %377 = vmatpush.bf16.msra.mxu0 0
      %378 = vmatpush.bf16.msra.mxu0 0
      %379 = vmatpush.bf16.msra.mxu0 0
      %380 = vmatpush.bf16.msra.mxu0 0
      %381 = vmatpush.bf16.msra.mxu0 0
      %382 = vmatpush.bf16.msra.mxu0 %v373
      %383 = vmatmul.bf16.gmra.mxu0 %v370
      %v384 = vpop.f32.mrf.mxu0
      %v385 = vadd.f32 0.0, %v384
      %v386 = vpop.f32.mrf.mxu0
      %387 = vdwg.mxu0
      %v388 = vmul.f32 %v366, %v345
      %v389 = vmul.f32 %v385, %v346
      %v390 = vsel %vm241, %v388, 0.0
      %v391 = vsel %vm241, %v389, 0.0
      %v392 = vadd.f32 %v233, %v390
      %v393 = vadd.f32 %v234, %v391
    $region58: #{tpu_custom_call.1} parent=1 // loop_footer
      %s232 = sadd.s32 1, %s228
    $region59: #{tpu_custom_call.1} parent=1 // loop_footer_branch
      %227 = sbr.rel target = $region55
    $region60: #{tpu_custom_call.1} parent=1 // loop_exit
      _
    %v394 = vpack.c.bf16 %v234, %v233
    %v395 = vld [vmem:[%s3] sm:$0xf]
    %v396 = vld [vmem:[%s3 + $0x4] sm:$0xf]
    %v397 = vld [vmem:[%s3 + $0x8] sm:$0xf]
    %v398 = vld [vmem:[%s3 + $0xc] sm:$0xf]
    %v399 = vld [vmem:[%s3 + $0x10] sm:$0xf]
    %v400 = vld [vmem:[%s3 + $0x14] sm:$0xf]
    %v401 = vld [vmem:[%s3 + $0x18] sm:$0xf]
    %v402 = vld [vmem:[%s3 + $0x1c] sm:$0xf]
    %v403 = vld [vmem:[%s4] sm:$0x1]
    %v405 = vperm.slane %v403, 0
    %v415 = vunpack.c.l.b16 %v395
    %v416 = vunpack.c.l.b16 %v396
    %v417 = vunpack.c.l.b16 %v397
    %v418 = vunpack.c.l.b16 %v398
    %v419 = vunpack.c.l.b16 %v399
    %v420 = vunpack.c.l.b16 %v400
    %v421 = vunpack.c.l.b16 %v401
    %v422 = vunpack.c.l.b16 %v402
    %v423 = vpack.c.b16 %v416, %v415
    %v424 = vpack.c.b16 %v418, %v417
    %v425 = vpack.c.b16 %v420, %v419
    %v426 = vpack.c.b16 %v422, %v421
    %v432 = vsel %vm103, %v394, 0
    %434 = vmatpush.bf16.msra.mxu0 0
    %435 = vmatpush.bf16.msra.mxu0 0
    %436 = vmatpush.bf16.msra.mxu0 0
    %437 = vmatpush.bf16.msra.mxu0 0
    %438 = vmatpush.bf16.msra.mxu0 %v426
    %439 = vmatpush.bf16.msra.mxu0 %v425
    %440 = vmatpush.bf16.msra.mxu0 %v424
    %441 = vmatpush.bf16.msra.mxu0 %v423
    %442 = vmatmul.bf16.gmra.mxu0 %v432
    %v443 = vpop.f32.mrf.mxu0
    %v444 = vadd.f32 %v405, %v443
    %v445 = vpop.f32.mrf.mxu0
    %v446 = vadd.f32 %v405, %v445
    %447 = vdwg.mxu0
    %v448 = vadd.f32 %v46, %v444
    %v449 = vadd.f32 %v47, %v446
    %v450 = vld [vmem:[%s5] sm:$0x1]
    %v451 = vld [vmem:[%s6] sm:$0x1]
    %v452 = vsel %vm103, %v448, 0.0
    %453 = vadd.xlane.f32.xlu0 %v452
    %v454 = vpop.xlane.xlu0 %453
    %v455 = vsel %vm103, %v449, 0.0
    %456 = vadd.xlane.f32.xlu0 %v455
    %v457 = vpop.xlane.xlu0 %456
    %v458 = vrcp.pop 64.0
    %v459 = vmul.f32 64.0, %v458
    %v460 = vsub.f32 1.0, %v459
    %v461 = vmul.f32 %v458, %v460
    %v462 = vadd.f32 %v458, %v461
    %vm463 = vweird.f32 %v458
    %v464 = vsel %vm463, %v458, %v462
    %v465 = vmul.f32 %v454, %v464
    %v466 = vmul.f32 %v457, %v464
    %v467 = vsub.f32 %v448, %v465
    %v468 = vsub.f32 %v449, %v466
    %v469 = vmul.f32 %v467, %v467
    %v470 = vmul.f32 %v468, %v468
    %v471 = vsel %vm103, %v469, 0.0
    %472 = vadd.xlane.f32.xlu0 %v471
    %v473 = vpop.xlane.xlu0 %472
    %v474 = vsel %vm103, %v470, 0.0
    %475 = vadd.xlane.f32.xlu0 %v474
    %v476 = vpop.xlane.xlu0 %475
    %v477 = vmul.f32 %v473, %v464
    %v478 = vmul.f32 %v476, %v464
    %v479 = vadd.f32 %v477, 1e-05
    %v480 = vadd.f32 %v478, 1e-05
    %v481 = vrsqrt.pop %v479
    %v482 = vmul.f32 %v481, %v479
    %v483 = vmul.f32 %v482, %v481
    %v484 = vmul.f32 0.5, %v483
    %v485 = vsub.f32 1.5, %v484
    %v486 = vmul.f32 %v481, %v485
    %vm487 = vweird.f32 %v479
    %vm488 = vweird.f32 %v481
    %vm489 = vmor %vm487, %vm488
    %v490 = vsel %vm489, %v481, %v486
    %v491 = vrsqrt.pop %v480
    %v492 = vmul.f32 %v491, %v480
    %v493 = vmul.f32 %v492, %v491
    %v494 = vmul.f32 0.5, %v493
    %v495 = vsub.f32 1.5, %v494
    %v496 = vmul.f32 %v491, %v495
    %vm497 = vweird.f32 %v480
    %vm498 = vweird.f32 %v491
    %vm499 = vmor %vm497, %vm498
    %v500 = vsel %vm499, %v491, %v496
    %v501 = vmul.f32 %v467, %v490
    %v502 = vmul.f32 %v468, %v500
    %v504 = vperm.slane %v450, 0
    %v506 = vmul.f32 %v501, %v504
    %v507 = vmul.f32 %v502, %v504
    %v509 = vperm.slane %v451, 0
    %v511 = vadd.f32 %v506, %v509
    %v512 = vadd.f32 %v507, %v509
    %v513 = vpack.c.bf16 %v512, %v511
    %v514 = vld [vmem:[%s7] sm:$0xff]
    %v515 = vld [vmem:[%s7 + $0x8] sm:$0xff]
    %v516 = vld [vmem:[%s7 + $0x10] sm:$0xff]
    %v517 = vld [vmem:[%s7 + $0x18] sm:$0xff]
    %v518 = vld [vmem:[%s7 + $0x20] sm:$0xff]
    %v519 = vld [vmem:[%s7 + $0x28] sm:$0xff]
    %v520 = vld [vmem:[%s7 + $0x30] sm:$0xff]
    %v521 = vld [vmem:[%s7 + $0x38] sm:$0xff]
    %v522 = vld [vmem:[%s8] sm:$0x3]
    %v524 = vperm.slane %v522, 0
    %v525 = vperm.slane %v522, 1
    %v536 = vunpack.c.l.b16 %v514
    %v537 = vunpack.c.h.b16 %v514
    %v538 = vunpack.c.l.b16 %v515
    %v539 = vunpack.c.h.b16 %v515
    %v540 = vunpack.c.l.b16 %v516
    %v541 = vunpack.c.h.b16 %v516
    %v542 = vunpack.c.l.b16 %v517
    %v543 = vunpack.c.h.b16 %v517
    %v544 = vunpack.c.l.b16 %v518
    %v545 = vunpack.c.h.b16 %v518
    %v546 = vunpack.c.l.b16 %v519
    %v547 = vunpack.c.h.b16 %v519
    %v548 = vunpack.c.l.b16 %v520
    %v549 = vunpack.c.h.b16 %v520
    %v550 = vunpack.c.l.b16 %v521
    %v551 = vunpack.c.h.b16 %v521
    %v552 = vpack.c.b16 %v538, %v536
    %v553 = vpack.c.b16 %v539, %v537
    %v554 = vpack.c.b16 %v542, %v540
    %v555 = vpack.c.b16 %v543, %v541
    %v556 = vpack.c.b16 %v546, %v544
    %v557 = vpack.c.b16 %v547, %v545
    %v558 = vpack.c.b16 %v550, %v548
    %v559 = vpack.c.b16 %v551, %v549
    %v569 = vsel %vm103, %v513, 0
    %571 = vmatpush.bf16.msra.mxu0 0
    %572 = vmatpush.bf16.msra.mxu0 0
    %573 = vmatpush.bf16.msra.mxu0 0
    %574 = vmatpush.bf16.msra.mxu0 0
    %575 = vmatpush.bf16.msra.mxu0 %v558
    %576 = vmatpush.bf16.msra.mxu0 %v556
    %577 = vmatpush.bf16.msra.mxu0 %v554
    %578 = vmatpush.bf16.msra.mxu0 %v552
    %579 = vmatmul.bf16.gmra.mxu0 %v569
    %v580 = vpop.f32.mrf.mxu0
    %v581 = vadd.f32 %v524, %v580
    %v582 = vpop.f32.mrf.mxu0
    %v583 = vadd.f32 %v524, %v582
    %584 = vdwg.mxu0
    %585 = vmatpush.bf16.msra.mxu0 0
    %586 = vmatpush.bf16.msra.mxu0 0
    %587 = vmatpush.bf16.msra.mxu0 0
    %588 = vmatpush.bf16.msra.mxu0 0
    %589 = vmatpush.bf16.msra.mxu0 %v559
    %590 = vmatpush.bf16.msra.mxu0 %v557
    %591 = vmatpush.bf16.msra.mxu0 %v555
    %592 = vmatpush.bf16.msra.mxu0 %v553
    %593 = vmatmul.bf16.gmra.mxu0 %v569
    %v594 = vpop.f32.mrf.mxu0
    %v595 = vadd.f32 %v525, %v594
    %v596 = vpop.f32.mrf.mxu0
    %v597 = vadd.f32 %v525, %v596
    %598 = vdwg.mxu0
    %v599 = vmax.f32 %v581, 0.0
    %v600 = vmax.f32 %v595, 0.0
    %v601 = vmax.f32 %v583, 0.0
    %v602 = vmax.f32 %v597, 0.0
    %v603 = vpack.c.bf16 %v601, %v599
    %v604 = vpack.c.bf16 %v602, %v600
    %v605 = vld [vmem:[%s9] sm:$0xf]
    %v606 = vld [vmem:[%s9 + $0x4] sm:$0xf]
    %v607 = vld [vmem:[%s9 + $0x8] sm:$0xf]
    %v608 = vld [vmem:[%s9 + $0xc] sm:$0xf]
    %v609 = vld [vmem:[%s9 + $0x10] sm:$0xf]
    %v610 = vld [vmem:[%s9 + $0x14] sm:$0xf]
    %v611 = vld [vmem:[%s9 + $0x18] sm:$0xf]
    %v612 = vld [vmem:[%s9 + $0x1c] sm:$0xf]
    %v613 = vld [vmem:[%s9 + $0x20] sm:$0xf]
    %v614 = vld [vmem:[%s9 + $0x24] sm:$0xf]
    %v615 = vld [vmem:[%s9 + $0x28] sm:$0xf]
    %v616 = vld [vmem:[%s9 + $0x2c] sm:$0xf]
    %v617 = vld [vmem:[%s9 + $0x30] sm:$0xf]
    %v618 = vld [vmem:[%s9 + $0x34] sm:$0xf]
    %v619 = vld [vmem:[%s9 + $0x38] sm:$0xf]
    %v620 = vld [vmem:[%s9 + $0x3c] sm:$0xf]
    %v621 = vld [vmem:[%s9 + $0x40] sm:$0xf]
    %v622 = vld [vmem:[%s9 + $0x44] sm:$0xf]
    %v623 = vld [vmem:[%s9 + $0x48] sm:$0xf]
    %v624 = vld [vmem:[%s9 + $0x4c] sm:$0xf]
    %v625 = vld [vmem:[%s9 + $0x50] sm:$0xf]
    %v626 = vld [vmem:[%s9 + $0x54] sm:$0xf]
    %v627 = vld [vmem:[%s9 + $0x58] sm:$0xf]
    %v628 = vld [vmem:[%s9 + $0x5c] sm:$0xf]
    %v629 = vld [vmem:[%s9 + $0x60] sm:$0xf]
    %v630 = vld [vmem:[%s9 + $0x64] sm:$0xf]
    %v631 = vld [vmem:[%s9 + $0x68] sm:$0xf]
    %v632 = vld [vmem:[%s9 + $0x6c] sm:$0xf]
    %v633 = vld [vmem:[%s9 + $0x70] sm:$0xf]
    %v634 = vld [vmem:[%s9 + $0x74] sm:$0xf]
    %v635 = vld [vmem:[%s9 + $0x78] sm:$0xf]
    %v636 = vld [vmem:[%s9 + $0x7c] sm:$0xf]
    %v637 = vld [vmem:[%s10] sm:$0x1]
    %v639 = vperm.slane %v637, 0
    %v673 = vunpack.c.l.b16 %v605
    %v674 = vunpack.c.l.b16 %v606
    %v675 = vunpack.c.l.b16 %v607
    %v676 = vunpack.c.l.b16 %v608
    %v677 = vunpack.c.l.b16 %v609
    %v678 = vunpack.c.l.b16 %v610
    %v679 = vunpack.c.l.b16 %v611
    %v680 = vunpack.c.l.b16 %v612
    %v681 = vunpack.c.l.b16 %v613
    %v682 = vunpack.c.l.b16 %v614
    %v683 = vunpack.c.l.b16 %v615
    %v684 = vunpack.c.l.b16 %v616
    %v685 = vunpack.c.l.b16 %v617
    %v686 = vunpack.c.l.b16 %v618
    %v687 = vunpack.c.l.b16 %v619
    %v688 = vunpack.c.l.b16 %v620
    %v689 = vunpack.c.l.b16 %v621
    %v690 = vunpack.c.l.b16 %v622
    %v691 = vunpack.c.l.b16 %v623
    %v692 = vunpack.c.l.b16 %v624
    %v693 = vunpack.c.l.b16 %v625
    %v694 = vunpack.c.l.b16 %v626
    %v695 = vunpack.c.l.b16 %v627
    %v696 = vunpack.c.l.b16 %v628
    %v697 = vunpack.c.l.b16 %v629
    %v698 = vunpack.c.l.b16 %v630
    %v699 = vunpack.c.l.b16 %v631
    %v700 = vunpack.c.l.b16 %v632
    %v701 = vunpack.c.l.b16 %v633
    %v702 = vunpack.c.l.b16 %v634
    %v703 = vunpack.c.l.b16 %v635
    %v704 = vunpack.c.l.b16 %v636
    %v705 = vpack.c.b16 %v674, %v673
    %v706 = vpack.c.b16 %v676, %v675
    %v707 = vpack.c.b16 %v678, %v677
    %v708 = vpack.c.b16 %v680, %v679
    %v709 = vpack.c.b16 %v682, %v681
    %v710 = vpack.c.b16 %v684, %v683
    %v711 = vpack.c.b16 %v686, %v685
    %v712 = vpack.c.b16 %v688, %v687
    %v713 = vpack.c.b16 %v690, %v689
    %v714 = vpack.c.b16 %v692, %v691
    %v715 = vpack.c.b16 %v694, %v693
    %v716 = vpack.c.b16 %v696, %v695
    %v717 = vpack.c.b16 %v698, %v697
    %v718 = vpack.c.b16 %v700, %v699
    %v719 = vpack.c.b16 %v702, %v701
    %v720 = vpack.c.b16 %v704, %v703
    %737 = vmatpush.bf16.msra.mxu0 %v712
    %738 = vmatpush.bf16.msra.mxu0 %v711
    %739 = vmatpush.bf16.msra.mxu0 %v710
    %740 = vmatpush.bf16.msra.mxu0 %v709
    %741 = vmatpush.bf16.msra.mxu0 %v708
    %742 = vmatpush.bf16.msra.mxu0 %v707
    %743 = vmatpush.bf16.msra.mxu0 %v706
    %744 = vmatpush.bf16.msra.mxu0 %v705
    %745 = vmatmul.bf16.gmra.mxu0 %v603
    %v746 = vpop.f32.mrf.mxu0
    %v747 = vadd.f32 %v639, %v746
    %v748 = vpop.f32.mrf.mxu0
    %v749 = vadd.f32 %v639, %v748
    %750 = vdwg.mxu0
    %751 = vmatpush.bf16.msra.mxu0 %v720
    %752 = vmatpush.bf16.msra.mxu0 %v719
    %753 = vmatpush.bf16.msra.mxu0 %v718
    %754 = vmatpush.bf16.msra.mxu0 %v717
    %755 = vmatpush.bf16.msra.mxu0 %v716
    %756 = vmatpush.bf16.msra.mxu0 %v715
    %757 = vmatpush.bf16.msra.mxu0 %v714
    %758 = vmatpush.bf16.msra.mxu0 %v713
    %759 = vmatmul.bf16.gmra.mxu0 %v604
    %v760 = vpop.f32.mrf.mxu0
    %v761 = vadd.f32 %v747, %v760
    %v762 = vpop.f32.mrf.mxu0
    %v763 = vadd.f32 %v749, %v762
    %764 = vdwg.mxu0
    %v765 = vadd.f32 %v511, %v761
    %v766 = vadd.f32 %v512, %v763
    %v767 = vld [vmem:[%s11] sm:$0x1]
    %v768 = vld [vmem:[%s12] sm:$0x1]
    %v769 = vsel %vm103, %v765, 0.0
    %770 = vadd.xlane.f32.xlu0 %v769
    %v771 = vpop.xlane.xlu0 %770
    %v772 = vsel %vm103, %v766, 0.0
    %773 = vadd.xlane.f32.xlu0 %v772
    %v774 = vpop.xlane.xlu0 %773
    %v775 = vmul.f32 %v771, %v464
    %v776 = vmul.f32 %v774, %v464
    %v777 = vsub.f32 %v765, %v775
    %v778 = vsub.f32 %v766, %v776
    %v779 = vmul.f32 %v777, %v777
    %v780 = vmul.f32 %v778, %v778
    %v781 = vsel %vm103, %v779, 0.0
    %782 = vadd.xlane.f32.xlu0 %v781
    %v783 = vpop.xlane.xlu0 %782
    %v784 = vsel %vm103, %v780, 0.0
    %785 = vadd.xlane.f32.xlu0 %v784
    %v786 = vpop.xlane.xlu0 %785
    %v787 = vmul.f32 %v783, %v464
    %v788 = vmul.f32 %v786, %v464
    %v789 = vadd.f32 %v787, 1e-05
    %v790 = vadd.f32 %v788, 1e-05
    %v791 = vrsqrt.pop %v789
    %v792 = vmul.f32 %v791, %v789
    %v793 = vmul.f32 %v792, %v791
    %v794 = vmul.f32 0.5, %v793
    %v795 = vsub.f32 1.5, %v794
    %v796 = vmul.f32 %v791, %v795
    %vm797 = vweird.f32 %v789
    %vm798 = vweird.f32 %v791
    %vm799 = vmor %vm797, %vm798
    %v800 = vsel %vm799, %v791, %v796
    %v801 = vrsqrt.pop %v790
    %v802 = vmul.f32 %v801, %v790
    %v803 = vmul.f32 %v802, %v801
    %v804 = vmul.f32 0.5, %v803
    %v805 = vsub.f32 1.5, %v804
    %v806 = vmul.f32 %v801, %v805
    %vm807 = vweird.f32 %v790
    %vm808 = vweird.f32 %v801
    %vm809 = vmor %vm807, %vm808
    %v810 = vsel %vm809, %v801, %v806
    %v811 = vmul.f32 %v777, %v800
    %v812 = vmul.f32 %v778, %v810
    %v814 = vperm.slane %v767, 0
    %v816 = vmul.f32 %v811, %v814
    %v817 = vmul.f32 %v812, %v814
    %v819 = vperm.slane %v768, 0
    %v821 = vadd.f32 %v816, %v819
    %v822 = vadd.f32 %v817, %v819
    %823 = vst.msk [vmem:[#allocation2] sm:$0xff] %vm103, %v821
    %824 = vst.msk [vmem:[#allocation2 + $0x8] sm:$0xff] %vm103, %v822
    // Predicated region
    $region61: #{tpu_custom_call.1} parent=1 // pred_check
      _
    $region62: #{tpu_custom_call.1} parent=1 // pred_check_branch
      %826 = sbr.rel (0) target = $region64
    $region63: #{tpu_custom_call.1} parent=1 // pred_region
      %828 = vsyncadd [#allocation3], 0
      %s829 = sshll.u32 [#allocation2], 4
      %s830 = int_to_ptr.vmem [resolvable:$true] %s829
      %s831 = sshll.u32 %s13, 4
      %s832 = int_to_ptr.hbm [resolvable:$true] %s831
      %837 = dma.vmem_to_hbm [thread:$0]  %s830, 256, %s832, [#allocation3], 128, 128, 8
    $region64: #{tpu_custom_call.1} parent=1 // pred_fallthru
      _
    // Predicated region
    $region65: #{tpu_custom_call.1} parent=1 // pred_check
      _
    $region66: #{tpu_custom_call.1} parent=1 // pred_check_branch
      %839 = sbr.rel (0) target = $region68
    $region67: #{tpu_custom_call.1} parent=1 // pred_region
      %841 = dma.done [#allocation3], 256
    $region68: #{tpu_custom_call.1} parent=1 // pred_fallthru
      _
    %842 = vsyncpa [#allocation3], 1

</llo_original>
